<compile_context>
chip_gen: v5e
topology: v5e:2x2
jax: 0.10.0
libtpu: 0.0.40
codegen_flags: <defaults>
</compile_context>

<pallas_src>
from functools import partial

import numpy as np
import jax
import jax.numpy as jnp
from jax import lax
from jax.experimental import pallas as pl
from jax.experimental.pallas import tpu as pltpu

SPECTRUM_LAYER = 2
ANSATZ_LAYER = 2
QLAYER_FEATURES = 2          # n_wires of each QuantumLayer
BN_EPS = 1e-5
LANE = 128                   # TPU lane width
SUB = 8                      # compute sub-tile height (one vreg of sublanes)
MAX_ROWS = 512               # max spatial tile height (block = (c, rows, 128))

# upper-triangle pair order of the folded observable H = A2^H (Z x I) A2
_PAIRS = ((0, 1), (0, 2), (0, 3), (1, 2), (1, 3), (2, 3))

# packed per-channel constant layout (see pack_circuit_constants)
_OFF_WR, _OFF_WI = 0, 16          # Re/Im of W (4x4): psi2 = W @ [cph,sph,cmh,smh]
_OFF_HD, _OFF_HRE, _OFF_HIM = 32, 36, 42   # diag(H), 2*Re(upper H), 2*Im(upper H)
_STATIC_LEN = 48                  # BN-folded (w0, w1, b0, b1) are appended after


# ----------------------------------------------------------------------------
# Pallas kernels
# ----------------------------------------------------------------------------

def _stats_kernel(coords_ref, acc_ref, *, c_in):
    """Accumulate per-channel first/second spatial moments of the coordinates.

    coords_ref: VMEM (c_in, rows, 128)        zero-padded spatial tile
    acc_ref:    VMEM (1, n_mom*8, 128) output sublane-partial sums, laid out as
                n_mom stacked (8,128) slabs: first the c_in first moments Σc_i,
                then the c_in*(c_in+1)/2 upper-triangle second moments Σc_i·c_j.
    """
    step = pl.program_id(1)

    @pl.when(step == 0)
    def _init():
        acc_ref[...] = jnp.zeros_like(acc_ref)

    rows = coords_ref.shape[1]
    n_mom = c_in + (c_in * (c_in + 1)) // 2

    def body(t, carry):
        off = pl.multiple_of(t * SUB, SUB)
        sl = pl.ds(off, SUB)
        ch = [coords_ref[i, sl, :] for i in range(c_in)]
        new = []
        k = 0
        for i in range(c_in):
            new.append(carry[k] + ch[i]); k += 1
        for i in range(c_in):
            for j in range(i, c_in):
                new.append(carry[k] + ch[i] * ch[j]); k += 1
        return tuple(new)

    init = tuple(jnp.zeros((SUB, LANE), jnp.float32) for _ in range(n_mom))
    parts = lax.fori_loop(0, rows // SUB, body, init)
    # (8,128) pieces are whole vregs -> concat along sublanes is layout-trivial
    acc_ref[...] += jnp.concatenate(parts, axis=0)[None]


def _qcircuit_kernel(cp_ref, coords_ref, o_ref, *, c_in):
    """Fused BN-normalization + 2-wire quantum circuit + <Z ⊗ I> on one tile.

    cp_ref: SMEM (out_channels, 48 + 2*c_in + 2) packed per-channel constants:
        [0:16]/[16:32]     Re/Im of W (row-major 4x4) with |00>, A0, A1 and the
                           first Dz folded in:  psi2 = W @ [cph, sph, cmh, smh]
        [32:36]            diag(H),  H = A2^H (Z⊗I) A2  (Hermitian, diag real)
        [36:42]/[42:48]    2*Re / 2*Im of upper triangle of H (pair order _PAIRS)
        [48:48+c]          w0 = inv_std0 * freq_row0   (BN folded into matmul)
        [48+c:48+2c]       w1 = inv_std1 * freq_row1
        [48+2c],[48+2c+1]  b0, b1 = -mean * inv_std
    coords_ref: VMEM (c_in, rows, 128) spatial tile of coordinates
    o_ref:      VMEM (1, rows, 128)    <Z ⊗ I> per pixel for this output channel
    """
    idx = pl.program_id(1)                       # output-channel index
    rows = coords_ref.shape[1]

    # hoist all per-channel scalar constants once per grid step (amortized
    # across rows // SUB compute sub-tiles)
    nb = _STATIC_LEN
    w0 = [cp_ref[idx, nb + i] for i in range(c_in)]
    w1 = [cp_ref[idx, nb + c_in + i] for i in range(c_in)]
    b0 = cp_ref[idx, nb + 2 * c_in]
    b1 = cp_ref[idx, nb + 2 * c_in + 1]
    wr = [[cp_ref[idx, _OFF_WR + 4 * r + k] for k in range(4)] for r in range(4)]
    wi = [[cp_ref[idx, _OFF_WI + 4 * r + k] for k in range(4)] for r in range(4)]
    hd = [cp_ref[idx, _OFF_HD + s] for s in range(4)]
    hre2 = [cp_ref[idx, _OFF_HRE + p] for p in range(6)]
    him2 = [cp_ref[idx, _OFF_HIM + p] for p in range(6)]

    # iterate (8,128) compute sub-tiles with an scf.for so code size and the
    # ~25 live complex temporaries stay bounded at large tile heights
    @pl.loop(0, rows // SUB)
    def _sub(t):
        off = pl.multiple_of(t * SUB, SUB)
        sl = pl.ds(off, SUB)

        # normalized encoding features: x = (freq @ coords - mean) * inv_std
        # with the BN stats folded into (w, b)
        c0 = coords_ref[0, sl, :]
        x0 = b0 + w0[0] * c0
        x1 = b1 + w1[0] * c0
        for i in range(1, c_in):
            ci = coords_ref[i, sl, :]
            x0 = x0 + w0[i] * ci
            x1 = x1 + w1[i] * ci

        # RZ-encoding half angles and trig basis
        hp = 0.5 * (x0 + x1)
        hm = 0.5 * (x0 - x1)
        cph, sph = jnp.cos(hp), jnp.sin(hp)
        cmh, smh = jnp.cos(hm), jnp.sin(hm)
        trig = (cph, sph, cmh, smh)

        # psi2 = A1 * Dz(x) * A0 |00>  with |00>, A0, A1 folded into W
        br, bi = [], []
        for r in range(4):
            ar = wr[r][0] * trig[0]
            ai = wi[r][0] * trig[0]
            for k in range(1, 4):
                ar = ar + wr[r][k] * trig[k]
                ai = ai + wi[r][k] * trig[k]
            br.append(ar)
            bi.append(ai)

        # psi3 = Dz(x) * psi2 ; phases e^{i*phi_s} for |00>,|01>,|10>,|11>
        ephr = (cph, cmh, cmh, cph)
        ephi = (-sph, -smh, smh, sph)
        pr = [br[s] * ephr[s] - bi[s] * ephi[s] for s in range(4)]
        pim = [br[s] * ephi[s] + bi[s] * ephr[s] for s in range(4)]

        # <Z ⊗ I> = psi3^H H psi3 (A2 folded into H; factor 2 folded into hre2/him2)
        ev = hd[0] * (pr[0] * pr[0] + pim[0] * pim[0])
        for r in range(1, 4):
            ev = ev + hd[r] * (pr[r] * pr[r] + pim[r] * pim[r])
        for p, (r, c) in enumerate(_PAIRS):
            re_x = pr[r] * pr[c] + pim[r] * pim[c]
            im_x = pr[r] * pim[c] - pim[r] * pr[c]
            ev = ev + (hre2[p] * re_x - him2[p] * im_x)

        o_ref[:, sl, :] = ev[None]


# ----------------------------------------------------------------------------
# Parameter setup glue (tiny, sample-independent gate algebra in numpy)
# ----------------------------------------------------------------------------

def _u3(theta, phi, lam):
    ct, st = np.cos(theta / 2.0), np.sin(theta / 2.0)
    return np.array(
        [[ct, -np.exp(1j * lam) * st],
         [np.exp(1j * phi) * st, np.exp(1j * (phi + lam)) * ct]],
        dtype=np.complex128)


_CNOT = np.array([[1, 0, 0, 0],
                  [0, 1, 0, 0],
                  [0, 0, 0, 1],
                  [0, 0, 1, 0]], dtype=np.complex128)   # control = wire 0 (MSB)


def _ansatz_block(params):        # params: (ANSATZ_LAYER, 2 wires, 3)
    a = np.eye(4, dtype=np.complex128)
    for j in range(ANSATZ_LAYER):
        u0 = _u3(*params[j, 0])   # wire 0
        u1 = _u3(*params[j, 1])   # wire 1
        a = _CNOT @ np.kron(u0, u1) @ a
    return a


def pack_circuit_constants(qcp, out_channels):
    """qcp: numpy (1, SPECTRUM+1, ANSATZ, out_channels*2, 3) -> (out_channels, 48) f32."""
    z_i = np.diag([1.0, 1.0, -1.0, -1.0]).astype(np.complex128)     # Z ⊗ I
    packed = np.zeros((out_channels, _STATIC_LEN), dtype=np.float32)
    for idx in range(out_channels):
        p = qcp[0, :, :, 2 * idx:2 * idx + 2, :]      # (3, 2, 2, 3)
        a0 = _ansatz_block(p[0])
        a1 = _ansatz_block(p[1])
        a2 = _ansatz_block(p[2])
        v0 = a0[:, 0]                                  # A0 |00>
        cols = a1 * v0[None, :]                        # col_s = v0[s] * A1[:, s]
        cp_ = cols[:, 0] + cols[:, 3]
        sp_ = 1j * (cols[:, 3] - cols[:, 0])
        cm_ = cols[:, 1] + cols[:, 2]
        sm_ = 1j * (cols[:, 2] - cols[:, 1])
        wmat = np.stack([cp_, sp_, cm_, sm_], axis=1)  # (4 rows, 4 trig coeffs)
        hmat = a2.conj().T @ z_i @ a2                  # Hermitian 4x4
        packed[idx, _OFF_WR:_OFF_WR + 16] = wmat.real.reshape(-1)
        packed[idx, _OFF_WI:_OFF_WI + 16] = wmat.imag.reshape(-1)
        packed[idx, _OFF_HD:_OFF_HD + 4] = np.real(np.diag(hmat))
        packed[idx, _OFF_HRE:_OFF_HRE + 6] = [2.0 * hmat.real[r, c] for r, c in _PAIRS]
        packed[idx, _OFF_HIM:_OFF_HIM + 6] = [2.0 * hmat.imag[r, c] for r, c in _PAIRS]
    return packed


# ----------------------------------------------------------------------------
# Forward wrapper
# ----------------------------------------------------------------------------

def quantum_circuit_features(coordinates, frequency_matrix, circuit_constants,
                             out_channels, rows=None):
    b, c, h, w = coordinates.shape
    hw = h * w
    orig_dtype = coordinates.dtype
    n_mom = c + (c * (c + 1)) // 2

    # spatial tiling: (hw) -> (s_total, 128); block = (c, rows, 128).
    # rows: as large as useful (<= 512, ~1.5 MiB double-buffered, fits every
    # generation's scoped-VMEM default), while keeping padding < one block and
    # an even block count for the 2-way TensorCore split of the stats pass.
    strips = (hw + LANE - 1) // LANE
    if rows is None:
        rows = min(MAX_ROWS, max(SUB, (((strips + 1) // 2 + SUB - 1) // SUB) * SUB))
    rows = max(SUB, (rows // SUB) * SUB)
    n_sblocks = (strips + rows - 1) // rows
    if n_sblocks % 2:
        n_sblocks += 1
    n_half = n_sblocks // 2
    s_total = n_sblocks * rows
    hw_pad = s_total * LANE

    # Only batch element 0 contributes to the output (PyTorch discards the rest).
    # Zero-pad the flattened spatial axis: zeros contribute nothing to the BN
    # moments and the padded circuit outputs are sliced off at the end.
    # TODO(synk): for very large H*W the explicit pad is an extra HBM pass; a
    # tail-masked variant would avoid it.
    coords0 = coordinates[0].reshape(c, hw).astype(jnp.float32)
    coords3 = jnp.pad(coords0, ((0, 0), (0, hw_pad - hw))).reshape(c, s_total, LANE)

    freq = frequency_matrix.astype(jnp.float32)            # (o2, c)

    # --- kernel 1: channel moments for BatchNorm1d statistics ---------------
    acc = pl.pallas_call(
        partial(_stats_kernel, c_in=c),
        out_shape=jax.ShapeDtypeStruct((2, n_mom * SUB, LANE), jnp.float32),
        grid=(2, n_half),
        in_specs=[
            pl.BlockSpec((c, rows, LANE), lambda p, s: (0, p * n_half + s, 0)),
        ],
        out_specs=pl.BlockSpec((1, n_mom * SUB, LANE), lambda p, s: (p, 0, 0)),
        compiler_params=pltpu.CompilerParams(
            dimension_semantics=("parallel", "arbitrary")),
    )(coords3)

    # tiny O(o2*c^2) epilogue: fold BN (mean, inv_std) into the frequency rows.
    # one-pass f32 variance (biased), as torch BatchNorm1d uses in training.
    mom = jnp.sum(acc.reshape(2, n_mom, SUB, LANE), axis=(0, 2, 3))   # (n_mom,)
    s1 = mom[:c]                                          # Σ c_i
    iu = np.triu_indices(c)
    smat = jnp.zeros((c, c), jnp.float32).at[iu].set(mom[c:])
    smat = smat + jnp.triu(smat, 1).T                     # Σ c_i c_j (symmetric)
    mean = (freq @ s1) / hw                               # (o2,)
    ex2 = jnp.einsum('oi,ij,oj->o', freq, smat, freq) / hw
    var = ex2 - mean * mean
    inv = jax.lax.rsqrt(var + BN_EPS)
    w_scaled = freq * inv[:, None]                        # (o2, c)
    bias = -mean * inv                                    # (o2,)
    dyn = jnp.concatenate(
        [w_scaled.reshape(out_channels, 2 * c), bias.reshape(out_channels, 2)],
        axis=1)
    cp = jnp.concatenate([circuit_constants.astype(jnp.float32), dyn], axis=1)

    # --- kernel 2: fused normalization + quantum circuit + <Z ⊗ I> ----------
    # grid order (spatial, channel): coords block index is constant across the
    # inner channel loop, so Pallas skips the re-fetch.
    qout = pl.pallas_call(
        partial(_qcircuit_kernel, c_in=c),
        out_shape=jax.ShapeDtypeStruct((out_channels, s_total, LANE), jnp.float32),
        grid=(n_sblocks, out_channels),
        in_specs=[
            pl.BlockSpec(memory_space=pltpu.MemorySpace.SMEM),          # constants
            pl.BlockSpec((c, rows, LANE), lambda s, i: (0, s, 0)),      # coords
        ],
        out_specs=pl.BlockSpec((1, rows, LANE), lambda s, i: (i, s, 0)),
        compiler_params=pltpu.CompilerParams(
            dimension_semantics=("parallel", "parallel")),
    )(cp, coords3)

    qmap = qout.reshape(out_channels, hw_pad)[:, :hw]
    qmap = qmap.reshape(out_channels, h, w).astype(orig_dtype)
    # PyTorch: out.repeat(b, 1, 1, 1)
    return jnp.broadcast_to(qmap[None], (b, out_channels, h, w))


# ----------------------------------------------------------------------------
# Pure numpy reference (gate-by-gate torchquantum semantics) for validation
# ----------------------------------------------------------------------------

def reference_forward(coords, freq, qcp, out_channels):
    coords = np.asarray(coords, np.float64)
    freq = np.asarray(freq, np.float64)
    qcp = np.asarray(qcp, np.float64)
    b, c, h, w = coords.shape
    hw = h * w
    o2 = out_channels * 2

    pre = np.einsum('oi,ihw->ohw', freq, coords[0]).reshape(o2, hw)
    mean = pre.mean(axis=1, keepdims=True)
    var = pre.var(axis=1, keepdims=True)
    xn = (pre - mean) / np.sqrt(var + BN_EPS)

    out = np.zeros((out_channels, hw))
    for idx in range(out_channels):
        x = xn[2 * idx:2 * idx + 2]                        # (2, hw)
        params = qcp[0, :, :, 2 * idx:2 * idx + 2, :]      # (3, 2, 2, 3)
        psi = np.zeros((hw, 4), dtype=np.complex128)
        psi[:, 0] = 1.0

        def u3_apply(psi, u, wire):
            p = psi.reshape(hw, 2, 2)
            p = np.einsum('ab,nbc->nac', u, p) if wire == 0 \
                else np.einsum('ab,ncb->nca', u, p)
            return p.reshape(hw, 4)

        def cnot_apply(psi):
            q = psi.copy()
            q[:, 2] = psi[:, 3]
            q[:, 3] = psi[:, 2]
            return q

        def rz_apply(psi, theta, wire):
            p = psi.reshape(hw, 2, 2)
            ph = np.stack([np.exp(-0.5j * theta), np.exp(0.5j * theta)], axis=1)
            p = p * (ph[:, :, None] if wire == 0 else ph[:, None, :])
            return p.reshape(hw, 4)

        def ansatz(psi, i):
            for j in range(ANSATZ_LAYER):
                for k in range(2):
                    psi = u3_apply(psi, _u3(*params[i, j, k]), k)
                psi = cnot_apply(psi)
            return psi

        psi = ansatz(psi, 0)
        for i in range(SPECTRUM_LAYER):
            for k in range(2):
                psi = rz_apply(psi, x[k], k)
            psi = ansatz(psi, i + 1)

        prob = np.abs(psi) ** 2
        out[idx] = prob[:, 0] + prob[:, 1] - prob[:, 2] - prob[:, 3]

    qmap = out.reshape(out_channels, h, w)
    return np.broadcast_to(qmap[None], (b, out_channels, h, w))


# ----------------------------------------------------------------------------

if __name__ == "__main__":
    b, in_channels, h, w = 2, 2, 16, 16
    out_channels = 4

    key = jax.random.PRNGKey(0)
    k1, k2, k3 = jax.random.split(key, 3)
    coordinates = jax.random.normal(k1, (b, in_channels, h, w), dtype=jnp.float32)
    frequency_matrix = jax.random.normal(
        k2, (out_channels * 2, in_channels), dtype=jnp.float32)
    quantum_circuit_param = jax.random.normal(
        k3, (1, SPECTRUM_LAYER + 1, ANSATZ_LAYER, out_channels * 2, 3),
        dtype=jnp.float32)

    circuit_constants = jnp.asarray(
        pack_circuit_constants(np.asarray(quantum_circuit_param), out_channels))

    fwd = jax.jit(partial(quantum_circuit_features, out_channels=out_channels))
    out = jax.block_until_ready(fwd(coordinates, frequency_matrix, circuit_constants))
    assert out.shape == (b, out_channels, h, w)
    assert out.dtype == coordinates.dtype

    ref = reference_forward(np.asarray(coordinates), np.asarray(frequency_matrix),
                            np.asarray(quantum_circuit_param), out_channels)
    np.testing.assert_allclose(np.asarray(out), ref, atol=3e-4, rtol=1e-3)

    print("KERNEL_OK")
</pallas_src>

<mosaic_0001>
module attributes {stable_mosaic.version = 11 : i64} {
  func.func @_stats_kernel(%arg0: i32, %arg1: i32, %arg2: memref<2x8x128xf32, #tpu.memory_space<vmem>>, %arg3: memref<1x40x128xf32, #tpu.memory_space<vmem>>) attributes {dimension_semantics = [#tpu.dimension_semantics<parallel>, #tpu.dimension_semantics<arbitrary>], iteration_bounds = array<i64: 2, 1>, scalar_prefetch = 0 : i64, scratch_operands = 0 : i64, tpu.core_type = #tpu.core_type<tc>, window_params = [{transform_indices = @transform_0, window_bounds = array<i64: 2, 8, 128>}, {transform_indices = @transform_1, window_bounds = array<i64: 1, 40, 128>}]} {
    %c0_i32 = arith.constant 0 : i32
    %0 = arith.cmpi eq, %arg1, %c0_i32 : i32
    %1 = arith.extui %0 : i1 to i32
    %c0_i32_0 = arith.constant 0 : i32
    %2 = arith.cmpi ne, %1, %c0_i32_0 : i32
    scf.if %2 {
      %cst_14 = arith.constant 0.000000e+00 : f32
      %29 = vector.broadcast %cst_14 : f32 to vector<1x40x128xf32>
      %c0_15 = arith.constant 0 : index
      %c0_16 = arith.constant 0 : index
      %c0_17 = arith.constant 0 : index
      %30 = vector.load %arg3[%c0_15, %c0_16, %c0_17] : memref<1x40x128xf32, #tpu.memory_space<vmem>>, vector<1x40x128xf32>
      tpu.vector_store %arg3[%c0_15, %c0_16, %c0_17], %29 {strides = array<i32>} : memref<1x40x128xf32, #tpu.memory_space<vmem>>, vector<1x40x128xf32>,
    } else {
    }
    %cst = arith.constant 0.000000e+00 : f32
    %3 = vector.broadcast %cst : f32 to vector<8x128xf32>
    %cst_1 = arith.constant 0.000000e+00 : f32
    %4 = vector.broadcast %cst_1 : f32 to vector<8x128xf32>
    %cst_2 = arith.constant 0.000000e+00 : f32
    %5 = vector.broadcast %cst_2 : f32 to vector<8x128xf32>
    %cst_3 = arith.constant 0.000000e+00 : f32
    %6 = vector.broadcast %cst_3 : f32 to vector<8x128xf32>
    %cst_4 = arith.constant 0.000000e+00 : f32
    %7 = vector.broadcast %cst_4 : f32 to vector<8x128xf32>
    %c0_i32_5 = arith.constant 0 : i32
    %c8_i32 = arith.constant 8 : i32
    %8 = arith.muli %c0_i32_5, %c8_i32 : i32
    %9 = tpu.assume_multiple %8, 8 : i32
    %c0 = arith.constant 0 : index
    %10 = arith.index_cast %9 : i32 to index
    %c0_6 = arith.constant 0 : index
    %11 = vector.load %arg2[%c0, %10, %c0_6] : memref<2x8x128xf32, #tpu.memory_space<vmem>>, vector<1x8x128xf32>
    %12 = vector.shape_cast %11 : vector<1x8x128xf32> to vector<8x128xf32>
    %c1 = arith.constant 1 : index
    %13 = arith.index_cast %9 : i32 to index
    %c0_7 = arith.constant 0 : index
    %14 = vector.load %arg2[%c1, %13, %c0_7] : memref<2x8x128xf32, #tpu.memory_space<vmem>>, vector<1x8x128xf32>
    %15 = vector.shape_cast %14 : vector<1x8x128xf32> to vector<8x128xf32>
    %16 = arith.addf %3, %12 : vector<8x128xf32>
    %17 = arith.addf %4, %15 : vector<8x128xf32>
    %18 = arith.mulf %12, %12 : vector<8x128xf32>
    %19 = arith.addf %5, %18 : vector<8x128xf32>
    %20 = arith.mulf %12, %15 : vector<8x128xf32>
    %21 = arith.addf %6, %20 : vector<8x128xf32>
    %22 = arith.mulf %15, %15 : vector<8x128xf32>
    %23 = arith.addf %7, %22 : vector<8x128xf32>
    %c1_i32 = arith.constant 1 : i32
    %c0_8 = arith.constant 0 : index
    %c0_9 = arith.constant 0 : index
    %c0_10 = arith.constant 0 : index
    %24 = vector.load %arg3[%c0_8, %c0_9, %c0_10] : memref<1x40x128xf32, #tpu.memory_space<vmem>>, vector<1x40x128xf32>
    %25 = tpu.concatenate %16, %17, %19, %21, %23 in 0 : vector<8x128xf32>, vector<8x128xf32>, vector<8x128xf32>, vector<8x128xf32>, vector<8x128xf32> -> vector<40x128xf32>
    %26 = vector.shape_cast %25 : vector<40x128xf32> to vector<1x40x128xf32>
    %27 = arith.addf %24, %26 : vector<1x40x128xf32>
    %c0_11 = arith.constant 0 : index
    %c0_12 = arith.constant 0 : index
    %c0_13 = arith.constant 0 : index
    %28 = vector.load %arg3[%c0_11, %c0_12, %c0_13] : memref<1x40x128xf32, #tpu.memory_space<vmem>>, vector<1x40x128xf32>
    tpu.vector_store %arg3[%c0_11, %c0_12, %c0_13], %27 {strides = array<i32>} : memref<1x40x128xf32, #tpu.memory_space<vmem>>, vector<1x40x128xf32>,
    return
  }
  func.func @transform_0(%arg0: i32, %arg1: i32) -> (i32, i32, i32) {
    %c1_i32 = arith.constant 1 : i32
    %0 = arith.muli %arg0, %c1_i32 : i32
    %1 = arith.addi %0, %arg1 : i32
    %c0_i32 = arith.constant 0 : i32
    %c0_i32_0 = arith.constant 0 : i32
    %c0_i32_1 = arith.constant 0 : i32
    return %c0_i32, %1, %c0_i32_0 : i32, i32, i32
  }
  func.func @transform_1(%arg0: i32, %arg1: i32) -> (i32, i32, i32) {
    %c0_i32 = arith.constant 0 : i32
    %c0_i32_0 = arith.constant 0 : i32
    %c0_i32_1 = arith.constant 0 : i32
    return %arg0, %c0_i32, %c0_i32_0 : i32, i32, i32
  }
}

module attributes {stable_mosaic.version = 11 : i64} {
  func.func @_qcircuit_kernel(%arg0: i32, %arg1: i32, %arg2: memref<4x54xf32, #tpu.memory_space<smem>>, %arg3: memref<2x8x128xf32, #tpu.memory_space<vmem>>, %arg4: memref<1x8x128xf32, #tpu.memory_space<vmem>>) attributes {dimension_semantics = [#tpu.dimension_semantics<parallel>, #tpu.dimension_semantics<parallel>], iteration_bounds = array<i64: 2, 4>, scalar_prefetch = 0 : i64, scratch_operands = 0 : i64, tpu.core_type = #tpu.core_type<tc>, window_params = [{transform_indices = @transform_0, window_bounds = array<i64: 4, 54>}, {transform_indices = @transform_1, window_bounds = array<i64: 2, 8, 128>}, {transform_indices = @transform_2, window_bounds = array<i64: 1, 8, 128>}]} {
    %0 = arith.index_cast %arg1 : i32 to index
    %c48 = arith.constant 48 : index
    %1 = memref.load %arg2[%0, %c48] : memref<4x54xf32, #tpu.memory_space<smem>>
    %2 = arith.index_cast %arg1 : i32 to index
    %c49 = arith.constant 49 : index
    %3 = memref.load %arg2[%2, %c49] : memref<4x54xf32, #tpu.memory_space<smem>>
    %4 = arith.index_cast %arg1 : i32 to index
    %c50 = arith.constant 50 : index
    %5 = memref.load %arg2[%4, %c50] : memref<4x54xf32, #tpu.memory_space<smem>>
    %6 = arith.index_cast %arg1 : i32 to index
    %c51 = arith.constant 51 : index
    %7 = memref.load %arg2[%6, %c51] : memref<4x54xf32, #tpu.memory_space<smem>>
    %8 = arith.index_cast %arg1 : i32 to index
    %c52 = arith.constant 52 : index
    %9 = memref.load %arg2[%8, %c52] : memref<4x54xf32, #tpu.memory_space<smem>>
    %10 = arith.index_cast %arg1 : i32 to index
    %c53 = arith.constant 53 : index
    %11 = memref.load %arg2[%10, %c53] : memref<4x54xf32, #tpu.memory_space<smem>>
    %12 = arith.index_cast %arg1 : i32 to index
    %c0 = arith.constant 0 : index
    %13 = memref.load %arg2[%12, %c0] : memref<4x54xf32, #tpu.memory_space<smem>>
    %14 = arith.index_cast %arg1 : i32 to index
    %c1 = arith.constant 1 : index
    %15 = memref.load %arg2[%14, %c1] : memref<4x54xf32, #tpu.memory_space<smem>>
    %16 = arith.index_cast %arg1 : i32 to index
    %c2 = arith.constant 2 : index
    %17 = memref.load %arg2[%16, %c2] : memref<4x54xf32, #tpu.memory_space<smem>>
    %18 = arith.index_cast %arg1 : i32 to index
    %c3 = arith.constant 3 : index
    %19 = memref.load %arg2[%18, %c3] : memref<4x54xf32, #tpu.memory_space<smem>>
    %20 = arith.index_cast %arg1 : i32 to index
    %c4 = arith.constant 4 : index
    %21 = memref.load %arg2[%20, %c4] : memref<4x54xf32, #tpu.memory_space<smem>>
    %22 = arith.index_cast %arg1 : i32 to index
    %c5 = arith.constant 5 : index
    %23 = memref.load %arg2[%22, %c5] : memref<4x54xf32, #tpu.memory_space<smem>>
    %24 = arith.index_cast %arg1 : i32 to index
    %c6 = arith.constant 6 : index
    %25 = memref.load %arg2[%24, %c6] : memref<4x54xf32, #tpu.memory_space<smem>>
    %26 = arith.index_cast %arg1 : i32 to index
    %c7 = arith.constant 7 : index
    %27 = memref.load %arg2[%26, %c7] : memref<4x54xf32, #tpu.memory_space<smem>>
    %28 = arith.index_cast %arg1 : i32 to index
    %c8 = arith.constant 8 : index
    %29 = memref.load %arg2[%28, %c8] : memref<4x54xf32, #tpu.memory_space<smem>>
    %30 = arith.index_cast %arg1 : i32 to index
    %c9 = arith.constant 9 : index
    %31 = memref.load %arg2[%30, %c9] : memref<4x54xf32, #tpu.memory_space<smem>>
    %32 = arith.index_cast %arg1 : i32 to index
    %c10 = arith.constant 10 : index
    %33 = memref.load %arg2[%32, %c10] : memref<4x54xf32, #tpu.memory_space<smem>>
    %34 = arith.index_cast %arg1 : i32 to index
    %c11 = arith.constant 11 : index
    %35 = memref.load %arg2[%34, %c11] : memref<4x54xf32, #tpu.memory_space<smem>>
    %36 = arith.index_cast %arg1 : i32 to index
    %c12 = arith.constant 12 : index
    %37 = memref.load %arg2[%36, %c12] : memref<4x54xf32, #tpu.memory_space<smem>>
    %38 = arith.index_cast %arg1 : i32 to index
    %c13 = arith.constant 13 : index
    %39 = memref.load %arg2[%38, %c13] : memref<4x54xf32, #tpu.memory_space<smem>>
    %40 = arith.index_cast %arg1 : i32 to index
    %c14 = arith.constant 14 : index
    %41 = memref.load %arg2[%40, %c14] : memref<4x54xf32, #tpu.memory_space<smem>>
    %42 = arith.index_cast %arg1 : i32 to index
    %c15 = arith.constant 15 : index
    %43 = memref.load %arg2[%42, %c15] : memref<4x54xf32, #tpu.memory_space<smem>>
    %44 = arith.index_cast %arg1 : i32 to index
    %c16 = arith.constant 16 : index
    %45 = memref.load %arg2[%44, %c16] : memref<4x54xf32, #tpu.memory_space<smem>>
    %46 = arith.index_cast %arg1 : i32 to index
    %c17 = arith.constant 17 : index
    %47 = memref.load %arg2[%46, %c17] : memref<4x54xf32, #tpu.memory_space<smem>>
    %48 = arith.index_cast %arg1 : i32 to index
    %c18 = arith.constant 18 : index
    %49 = memref.load %arg2[%48, %c18] : memref<4x54xf32, #tpu.memory_space<smem>>
    %50 = arith.index_cast %arg1 : i32 to index
    %c19 = arith.constant 19 : index
    %51 = memref.load %arg2[%50, %c19] : memref<4x54xf32, #tpu.memory_space<smem>>
    %52 = arith.index_cast %arg1 : i32 to index
    %c20 = arith.constant 20 : index
    %53 = memref.load %arg2[%52, %c20] : memref<4x54xf32, #tpu.memory_space<smem>>
    %54 = arith.index_cast %arg1 : i32 to index
    %c21 = arith.constant 21 : index
    %55 = memref.load %arg2[%54, %c21] : memref<4x54xf32, #tpu.memory_space<smem>>
    %56 = arith.index_cast %arg1 : i32 to index
    %c22 = arith.constant 22 : index
    %57 = memref.load %arg2[%56, %c22] : memref<4x54xf32, #tpu.memory_space<smem>>
    %58 = arith.index_cast %arg1 : i32 to index
    %c23 = arith.constant 23 : index
    %59 = memref.load %arg2[%58, %c23] : memref<4x54xf32, #tpu.memory_space<smem>>
    %60 = arith.index_cast %arg1 : i32 to index
    %c24 = arith.constant 24 : index
    %61 = memref.load %arg2[%60, %c24] : memref<4x54xf32, #tpu.memory_space<smem>>
    %62 = arith.index_cast %arg1 : i32 to index
    %c25 = arith.constant 25 : index
    %63 = memref.load %arg2[%62, %c25] : memref<4x54xf32, #tpu.memory_space<smem>>
    %64 = arith.index_cast %arg1 : i32 to index
    %c26 = arith.constant 26 : index
    %65 = memref.load %arg2[%64, %c26] : memref<4x54xf32, #tpu.memory_space<smem>>
    %66 = arith.index_cast %arg1 : i32 to index
    %c27 = arith.constant 27 : index
    %67 = memref.load %arg2[%66, %c27] : memref<4x54xf32, #tpu.memory_space<smem>>
    %68 = arith.index_cast %arg1 : i32 to index
    %c28 = arith.constant 28 : index
    %69 = memref.load %arg2[%68, %c28] : memref<4x54xf32, #tpu.memory_space<smem>>
    %70 = arith.index_cast %arg1 : i32 to index
    %c29 = arith.constant 29 : index
    %71 = memref.load %arg2[%70, %c29] : memref<4x54xf32, #tpu.memory_space<smem>>
    %72 = arith.index_cast %arg1 : i32 to index
    %c30 = arith.constant 30 : index
    %73 = memref.load %arg2[%72, %c30] : memref<4x54xf32, #tpu.memory_space<smem>>
    %74 = arith.index_cast %arg1 : i32 to index
    %c31 = arith.constant 31 : index
    %75 = memref.load %arg2[%74, %c31] : memref<4x54xf32, #tpu.memory_space<smem>>
    %76 = arith.index_cast %arg1 : i32 to index
    %c32 = arith.constant 32 : index
    %77 = memref.load %arg2[%76, %c32] : memref<4x54xf32, #tpu.memory_space<smem>>
    %78 = arith.index_cast %arg1 : i32 to index
    %c33 = arith.constant 33 : index
    %79 = memref.load %arg2[%78, %c33] : memref<4x54xf32, #tpu.memory_space<smem>>
    %80 = arith.index_cast %arg1 : i32 to index
    %c34 = arith.constant 34 : index
    %81 = memref.load %arg2[%80, %c34] : memref<4x54xf32, #tpu.memory_space<smem>>
    %82 = arith.index_cast %arg1 : i32 to index
    %c35 = arith.constant 35 : index
    %83 = memref.load %arg2[%82, %c35] : memref<4x54xf32, #tpu.memory_space<smem>>
    %84 = arith.index_cast %arg1 : i32 to index
    %c36 = arith.constant 36 : index
    %85 = memref.load %arg2[%84, %c36] : memref<4x54xf32, #tpu.memory_space<smem>>
    %86 = arith.index_cast %arg1 : i32 to index
    %c37 = arith.constant 37 : index
    %87 = memref.load %arg2[%86, %c37] : memref<4x54xf32, #tpu.memory_space<smem>>
    %88 = arith.index_cast %arg1 : i32 to index
    %c38 = arith.constant 38 : index
    %89 = memref.load %arg2[%88, %c38] : memref<4x54xf32, #tpu.memory_space<smem>>
    %90 = arith.index_cast %arg1 : i32 to index
    %c39 = arith.constant 39 : index
    %91 = memref.load %arg2[%90, %c39] : memref<4x54xf32, #tpu.memory_space<smem>>
    %92 = arith.index_cast %arg1 : i32 to index
    %c40 = arith.constant 40 : index
    %93 = memref.load %arg2[%92, %c40] : memref<4x54xf32, #tpu.memory_space<smem>>
    %94 = arith.index_cast %arg1 : i32 to index
    %c41 = arith.constant 41 : index
    %95 = memref.load %arg2[%94, %c41] : memref<4x54xf32, #tpu.memory_space<smem>>
    %96 = arith.index_cast %arg1 : i32 to index
    %c42 = arith.constant 42 : index
    %97 = memref.load %arg2[%96, %c42] : memref<4x54xf32, #tpu.memory_space<smem>>
    %98 = arith.index_cast %arg1 : i32 to index
    %c43 = arith.constant 43 : index
    %99 = memref.load %arg2[%98, %c43] : memref<4x54xf32, #tpu.memory_space<smem>>
    %100 = arith.index_cast %arg1 : i32 to index
    %c44 = arith.constant 44 : index
    %101 = memref.load %arg2[%100, %c44] : memref<4x54xf32, #tpu.memory_space<smem>>
    %102 = arith.index_cast %arg1 : i32 to index
    %c45 = arith.constant 45 : index
    %103 = memref.load %arg2[%102, %c45] : memref<4x54xf32, #tpu.memory_space<smem>>
    %104 = arith.index_cast %arg1 : i32 to index
    %c46 = arith.constant 46 : index
    %105 = memref.load %arg2[%104, %c46] : memref<4x54xf32, #tpu.memory_space<smem>>
    %106 = arith.index_cast %arg1 : i32 to index
    %c47 = arith.constant 47 : index
    %107 = memref.load %arg2[%106, %c47] : memref<4x54xf32, #tpu.memory_space<smem>>
    %c0_i32 = arith.constant 0 : i32
    %c1_i32 = arith.constant 1 : i32
    %108 = arith.muli %c0_i32, %c1_i32 : i32
    %c0_i32_0 = arith.constant 0 : i32
    %109 = arith.addi %c0_i32_0, %108 : i32
    %c8_i32 = arith.constant 8 : i32
    %110 = arith.muli %109, %c8_i32 : i32
    %111 = tpu.assume_multiple %110, 8 : i32
    %c0_1 = arith.constant 0 : index
    %112 = arith.index_cast %111 : i32 to index
    %c0_2 = arith.constant 0 : index
    %113 = vector.load %arg3[%c0_1, %112, %c0_2] : memref<2x8x128xf32, #tpu.memory_space<vmem>>, vector<1x8x128xf32>
    %114 = vector.shape_cast %113 : vector<1x8x128xf32> to vector<8x128xf32>
    %115 = vector.broadcast %1 : f32 to vector<8x128xf32>
    %116 = arith.mulf %115, %114 : vector<8x128xf32>
    %117 = vector.broadcast %9 : f32 to vector<8x128xf32>
    %118 = arith.addf %117, %116 : vector<8x128xf32>
    %119 = vector.broadcast %5 : f32 to vector<8x128xf32>
    %120 = arith.mulf %119, %114 : vector<8x128xf32>
    %121 = vector.broadcast %11 : f32 to vector<8x128xf32>
    %122 = arith.addf %121, %120 : vector<8x128xf32>
    %c1_3 = arith.constant 1 : index
    %123 = arith.index_cast %111 : i32 to index
    %c0_4 = arith.constant 0 : index
    %124 = vector.load %arg3[%c1_3, %123, %c0_4] : memref<2x8x128xf32, #tpu.memory_space<vmem>>, vector<1x8x128xf32>
    %125 = vector.shape_cast %124 : vector<1x8x128xf32> to vector<8x128xf32>
    %126 = vector.broadcast %3 : f32 to vector<8x128xf32>
    %127 = arith.mulf %126, %125 : vector<8x128xf32>
    %128 = arith.addf %118, %127 : vector<8x128xf32>
    %129 = vector.broadcast %7 : f32 to vector<8x128xf32>
    %130 = arith.mulf %129, %125 : vector<8x128xf32>
    %131 = arith.addf %122, %130 : vector<8x128xf32>
    %132 = arith.addf %128, %131 : vector<8x128xf32>
    %cst = arith.constant 5.000000e-01 : f32
    %133 = vector.broadcast %cst : f32 to vector<8x128xf32>
    %134 = arith.mulf %133, %132 : vector<8x128xf32>
    %135 = arith.subf %128, %131 : vector<8x128xf32>
    %cst_5 = arith.constant 5.000000e-01 : f32
    %136 = vector.broadcast %cst_5 : f32 to vector<8x128xf32>
    %137 = arith.mulf %136, %135 : vector<8x128xf32>
    %138 = math.cos %134 : vector<8x128xf32>
    %139 = math.sin %134 : vector<8x128xf32>
    %140 = math.cos %137 : vector<8x128xf32>
    %141 = math.sin %137 : vector<8x128xf32>
    %142 = vector.broadcast %13 : f32 to vector<8x128xf32>
    %143 = arith.mulf %142, %138 : vector<8x128xf32>
    %144 = vector.broadcast %45 : f32 to vector<8x128xf32>
    %145 = arith.mulf %144, %138 : vector<8x128xf32>
    %146 = vector.broadcast %15 : f32 to vector<8x128xf32>
    %147 = arith.mulf %146, %139 : vector<8x128xf32>
    %148 = arith.addf %143, %147 : vector<8x128xf32>
    %149 = vector.broadcast %47 : f32 to vector<8x128xf32>
    %150 = arith.mulf %149, %139 : vector<8x128xf32>
    %151 = arith.addf %145, %150 : vector<8x128xf32>
    %152 = vector.broadcast %17 : f32 to vector<8x128xf32>
    %153 = arith.mulf %152, %140 : vector<8x128xf32>
    %154 = arith.addf %148, %153 : vector<8x128xf32>
    %155 = vector.broadcast %49 : f32 to vector<8x128xf32>
    %156 = arith.mulf %155, %140 : vector<8x128xf32>
    %157 = arith.addf %151, %156 : vector<8x128xf32>
    %158 = vector.broadcast %19 : f32 to vector<8x128xf32>
    %159 = arith.mulf %158, %141 : vector<8x128xf32>
    %160 = arith.addf %154, %159 : vector<8x128xf32>
    %161 = vector.broadcast %51 : f32 to vector<8x128xf32>
    %162 = arith.mulf %161, %141 : vector<8x128xf32>
    %163 = arith.addf %157, %162 : vector<8x128xf32>
    %164 = vector.broadcast %21 : f32 to vector<8x128xf32>
    %165 = arith.mulf %164, %138 : vector<8x128xf32>
    %166 = vector.broadcast %53 : f32 to vector<8x128xf32>
    %167 = arith.mulf %166, %138 : vector<8x128xf32>
    %168 = vector.broadcast %23 : f32 to vector<8x128xf32>
    %169 = arith.mulf %168, %139 : vector<8x128xf32>
    %170 = arith.addf %165, %169 : vector<8x128xf32>
    %171 = vector.broadcast %55 : f32 to vector<8x128xf32>
    %172 = arith.mulf %171, %139 : vector<8x128xf32>
    %173 = arith.addf %167, %172 : vector<8x128xf32>
    %174 = vector.broadcast %25 : f32 to vector<8x128xf32>
    %175 = arith.mulf %174, %140 : vector<8x128xf32>
    %176 = arith.addf %170, %175 : vector<8x128xf32>
    %177 = vector.broadcast %57 : f32 to vector<8x128xf32>
    %178 = arith.mulf %177, %140 : vector<8x128xf32>
    %179 = arith.addf %173, %178 : vector<8x128xf32>
    %180 = vector.broadcast %27 : f32 to vector<8x128xf32>
    %181 = arith.mulf %180, %141 : vector<8x128xf32>
    %182 = arith.addf %176, %181 : vector<8x128xf32>
    %183 = vector.broadcast %59 : f32 to vector<8x128xf32>
    %184 = arith.mulf %183, %141 : vector<8x128xf32>
    %185 = arith.addf %179, %184 : vector<8x128xf32>
    %186 = vector.broadcast %29 : f32 to vector<8x128xf32>
    %187 = arith.mulf %186, %138 : vector<8x128xf32>
    %188 = vector.broadcast %61 : f32 to vector<8x128xf32>
    %189 = arith.mulf %188, %138 : vector<8x128xf32>
    %190 = vector.broadcast %31 : f32 to vector<8x128xf32>
    %191 = arith.mulf %190, %139 : vector<8x128xf32>
    %192 = arith.addf %187, %191 : vector<8x128xf32>
    %193 = vector.broadcast %63 : f32 to vector<8x128xf32>
    %194 = arith.mulf %193, %139 : vector<8x128xf32>
    %195 = arith.addf %189, %194 : vector<8x128xf32>
    %196 = vector.broadcast %33 : f32 to vector<8x128xf32>
    %197 = arith.mulf %196, %140 : vector<8x128xf32>
    %198 = arith.addf %192, %197 : vector<8x128xf32>
    %199 = vector.broadcast %65 : f32 to vector<8x128xf32>
    %200 = arith.mulf %199, %140 : vector<8x128xf32>
    %201 = arith.addf %195, %200 : vector<8x128xf32>
    %202 = vector.broadcast %35 : f32 to vector<8x128xf32>
    %203 = arith.mulf %202, %141 : vector<8x128xf32>
    %204 = arith.addf %198, %203 : vector<8x128xf32>
    %205 = vector.broadcast %67 : f32 to vector<8x128xf32>
    %206 = arith.mulf %205, %141 : vector<8x128xf32>
    %207 = arith.addf %201, %206 : vector<8x128xf32>
    %208 = vector.broadcast %37 : f32 to vector<8x128xf32>
    %209 = arith.mulf %208, %138 : vector<8x128xf32>
    %210 = vector.broadcast %69 : f32 to vector<8x128xf32>
    %211 = arith.mulf %210, %138 : vector<8x128xf32>
    %212 = vector.broadcast %39 : f32 to vector<8x128xf32>
    %213 = arith.mulf %212, %139 : vector<8x128xf32>
    %214 = arith.addf %209, %213 : vector<8x128xf32>
    %215 = vector.broadcast %71 : f32 to vector<8x128xf32>
    %216 = arith.mulf %215, %139 : vector<8x128xf32>
    %217 = arith.addf %211, %216 : vector<8x128xf32>
    %218 = vector.broadcast %41 : f32 to vector<8x128xf32>
    %219 = arith.mulf %218, %140 : vector<8x128xf32>
    %220 = arith.addf %214, %219 : vector<8x128xf32>
    %221 = vector.broadcast %73 : f32 to vector<8x128xf32>
    %222 = arith.mulf %221, %140 : vector<8x128xf32>
    %223 = arith.addf %217, %222 : vector<8x128xf32>
    %224 = vector.broadcast %43 : f32 to vector<8x128xf32>
    %225 = arith.mulf %224, %141 : vector<8x128xf32>
    %226 = arith.addf %220, %225 : vector<8x128xf32>
    %227 = vector.broadcast %75 : f32 to vector<8x128xf32>
    %228 = arith.mulf %227, %141 : vector<8x128xf32>
    %229 = arith.addf %223, %228 : vector<8x128xf32>
    %cst_6 = arith.constant 0.000000e+00 : f32
    %230 = vector.broadcast %cst_6 : f32 to vector<8x128xf32>
    %231 = arith.subf %230, %139 : vector<8x128xf32>
    %cst_7 = arith.constant 0.000000e+00 : f32
    %232 = vector.broadcast %cst_7 : f32 to vector<8x128xf32>
    %233 = arith.subf %232, %141 : vector<8x128xf32>
    %234 = arith.mulf %160, %138 : vector<8x128xf32>
    %235 = arith.mulf %163, %231 : vector<8x128xf32>
    %236 = arith.subf %234, %235 : vector<8x128xf32>
    %237 = arith.mulf %182, %140 : vector<8x128xf32>
    %238 = arith.mulf %185, %233 : vector<8x128xf32>
    %239 = arith.subf %237, %238 : vector<8x128xf32>
    %240 = arith.mulf %204, %140 : vector<8x128xf32>
    %241 = arith.mulf %207, %141 : vector<8x128xf32>
    %242 = arith.subf %240, %241 : vector<8x128xf32>
    %243 = arith.mulf %226, %138 : vector<8x128xf32>
    %244 = arith.mulf %229, %139 : vector<8x128xf32>
    %245 = arith.subf %243, %244 : vector<8x128xf32>
    %246 = arith.mulf %160, %231 : vector<8x128xf32>
    %247 = arith.mulf %163, %138 : vector<8x128xf32>
    %248 = arith.addf %246, %247 : vector<8x128xf32>
    %249 = arith.mulf %182, %233 : vector<8x128xf32>
    %250 = arith.mulf %185, %140 : vector<8x128xf32>
    %251 = arith.addf %249, %250 : vector<8x128xf32>
    %252 = arith.mulf %204, %141 : vector<8x128xf32>
    %253 = arith.mulf %207, %140 : vector<8x128xf32>
    %254 = arith.addf %252, %253 : vector<8x128xf32>
    %255 = arith.mulf %226, %139 : vector<8x128xf32>
    %256 = arith.mulf %229, %138 : vector<8x128xf32>
    %257 = arith.addf %255, %256 : vector<8x128xf32>
    %258 = arith.mulf %236, %236 : vector<8x128xf32>
    %259 = arith.mulf %248, %248 : vector<8x128xf32>
    %260 = arith.addf %258, %259 : vector<8x128xf32>
    %261 = vector.broadcast %77 : f32 to vector<8x128xf32>
    %262 = arith.mulf %261, %260 : vector<8x128xf32>
    %263 = arith.mulf %239, %239 : vector<8x128xf32>
    %264 = arith.mulf %251, %251 : vector<8x128xf32>
    %265 = arith.addf %263, %264 : vector<8x128xf32>
    %266 = vector.broadcast %79 : f32 to vector<8x128xf32>
    %267 = arith.mulf %266, %265 : vector<8x128xf32>
    %268 = arith.addf %262, %267 : vector<8x128xf32>
    %269 = arith.mulf %242, %242 : vector<8x128xf32>
    %270 = arith.mulf %254, %254 : vector<8x128xf32>
    %271 = arith.addf %269, %270 : vector<8x128xf32>
    %272 = vector.broadcast %81 : f32 to vector<8x128xf32>
    %273 = arith.mulf %272, %271 : vector<8x128xf32>
    %274 = arith.addf %268, %273 : vector<8x128xf32>
    %275 = arith.mulf %245, %245 : vector<8x128xf32>
    %276 = arith.mulf %257, %257 : vector<8x128xf32>
    %277 = arith.addf %275, %276 : vector<8x128xf32>
    %278 = vector.broadcast %83 : f32 to vector<8x128xf32>
    %279 = arith.mulf %278, %277 : vector<8x128xf32>
    %280 = arith.addf %274, %279 : vector<8x128xf32>
    %281 = arith.mulf %236, %239 : vector<8x128xf32>
    %282 = arith.mulf %248, %251 : vector<8x128xf32>
    %283 = arith.addf %281, %282 : vector<8x128xf32>
    %284 = arith.mulf %236, %251 : vector<8x128xf32>
    %285 = arith.mulf %248, %239 : vector<8x128xf32>
    %286 = arith.subf %284, %285 : vector<8x128xf32>
    %287 = vector.broadcast %85 : f32 to vector<8x128xf32>
    %288 = arith.mulf %287, %283 : vector<8x128xf32>
    %289 = vector.broadcast %97 : f32 to vector<8x128xf32>
    %290 = arith.mulf %289, %286 : vector<8x128xf32>
    %291 = arith.subf %288, %290 : vector<8x128xf32>
    %292 = arith.addf %280, %291 : vector<8x128xf32>
    %293 = arith.mulf %236, %242 : vector<8x128xf32>
    %294 = arith.mulf %248, %254 : vector<8x128xf32>
    %295 = arith.addf %293, %294 : vector<8x128xf32>
    %296 = arith.mulf %236, %254 : vector<8x128xf32>
    %297 = arith.mulf %248, %242 : vector<8x128xf32>
    %298 = arith.subf %296, %297 : vector<8x128xf32>
    %299 = vector.broadcast %87 : f32 to vector<8x128xf32>
    %300 = arith.mulf %299, %295 : vector<8x128xf32>
    %301 = vector.broadcast %99 : f32 to vector<8x128xf32>
    %302 = arith.mulf %301, %298 : vector<8x128xf32>
    %303 = arith.subf %300, %302 : vector<8x128xf32>
    %304 = arith.addf %292, %303 : vector<8x128xf32>
    %305 = arith.mulf %236, %245 : vector<8x128xf32>
    %306 = arith.mulf %248, %257 : vector<8x128xf32>
    %307 = arith.addf %305, %306 : vector<8x128xf32>
    %308 = arith.mulf %236, %257 : vector<8x128xf32>
    %309 = arith.mulf %248, %245 : vector<8x128xf32>
    %310 = arith.subf %308, %309 : vector<8x128xf32>
    %311 = vector.broadcast %89 : f32 to vector<8x128xf32>
    %312 = arith.mulf %311, %307 : vector<8x128xf32>
    %313 = vector.broadcast %101 : f32 to vector<8x128xf32>
    %314 = arith.mulf %313, %310 : vector<8x128xf32>
    %315 = arith.subf %312, %314 : vector<8x128xf32>
    %316 = arith.addf %304, %315 : vector<8x128xf32>
    %317 = arith.mulf %239, %242 : vector<8x128xf32>
    %318 = arith.mulf %251, %254 : vector<8x128xf32>
    %319 = arith.addf %317, %318 : vector<8x128xf32>
    %320 = arith.mulf %239, %254 : vector<8x128xf32>
    %321 = arith.mulf %251, %242 : vector<8x128xf32>
    %322 = arith.subf %320, %321 : vector<8x128xf32>
    %323 = vector.broadcast %91 : f32 to vector<8x128xf32>
    %324 = arith.mulf %323, %319 : vector<8x128xf32>
    %325 = vector.broadcast %103 : f32 to vector<8x128xf32>
    %326 = arith.mulf %325, %322 : vector<8x128xf32>
    %327 = arith.subf %324, %326 : vector<8x128xf32>
    %328 = arith.addf %316, %327 : vector<8x128xf32>
    %329 = arith.mulf %239, %245 : vector<8x128xf32>
    %330 = arith.mulf %251, %257 : vector<8x128xf32>
    %331 = arith.addf %329, %330 : vector<8x128xf32>
    %332 = arith.mulf %239, %257 : vector<8x128xf32>
    %333 = arith.mulf %251, %245 : vector<8x128xf32>
    %334 = arith.subf %332, %333 : vector<8x128xf32>
    %335 = vector.broadcast %93 : f32 to vector<8x128xf32>
    %336 = arith.mulf %335, %331 : vector<8x128xf32>
    %337 = vector.broadcast %105 : f32 to vector<8x128xf32>
    %338 = arith.mulf %337, %334 : vector<8x128xf32>
    %339 = arith.subf %336, %338 : vector<8x128xf32>
    %340 = arith.addf %328, %339 : vector<8x128xf32>
    %341 = arith.mulf %242, %245 : vector<8x128xf32>
    %342 = arith.mulf %254, %257 : vector<8x128xf32>
    %343 = arith.addf %341, %342 : vector<8x128xf32>
    %344 = arith.mulf %242, %257 : vector<8x128xf32>
    %345 = arith.mulf %254, %245 : vector<8x128xf32>
    %346 = arith.subf %344, %345 : vector<8x128xf32>
    %347 = vector.broadcast %95 : f32 to vector<8x128xf32>
    %348 = arith.mulf %347, %343 : vector<8x128xf32>
    %349 = vector.broadcast %107 : f32 to vector<8x128xf32>
    %350 = arith.mulf %349, %346 : vector<8x128xf32>
    %351 = arith.subf %348, %350 : vector<8x128xf32>
    %352 = arith.addf %340, %351 : vector<8x128xf32>
    %353 = vector.shape_cast %352 : vector<8x128xf32> to vector<1x8x128xf32>
    %c0_8 = arith.constant 0 : index
    %354 = arith.index_cast %111 : i32 to index
    %c0_9 = arith.constant 0 : index
    %355 = vector.load %arg4[%c0_8, %354, %c0_9] : memref<1x8x128xf32, #tpu.memory_space<vmem>>, vector<1x8x128xf32>
    tpu.vector_store %arg4[%c0_8, %354, %c0_9], %353 {strides = array<i32>} : memref<1x8x128xf32, #tpu.memory_space<vmem>>, vector<1x8x128xf32>,
    %c1_i32_10 = arith.constant 1 : i32
    return
  }
  func.func @transform_0(%arg0: i32, %arg1: i32) -> (i32, i32) {
    %c0_i32 = arith.constant 0 : i32
    %c0_i32_0 = arith.constant 0 : i32
    %c0_i32_1 = arith.constant 0 : i32
    return %c0_i32, %c0_i32_0 : i32, i32
  }
  func.func @transform_1(%arg0: i32, %arg1: i32) -> (i32, i32, i32) {
    %c0_i32 = arith.constant 0 : i32
    %c0_i32_0 = arith.constant 0 : i32
    %c0_i32_1 = arith.constant 0 : i32
    return %c0_i32, %arg0, %c0_i32_0 : i32, i32, i32
  }
  func.func @transform_2(%arg0: i32, %arg1: i32) -> (i32, i32, i32) {
    %c0_i32 = arith.constant 0 : i32
    %c0_i32_0 = arith.constant 0 : i32
    return %arg1, %arg0, %c0_i32 : i32, i32, i32
  }
}

</mosaic_0001>

<llo_original>
// kernel: squeeze.1
$region0: #{squeeze.1}
  %s0 = inlined_call_operand.vmem [shape: f32[1,2,16,16], index: 0, kind: input, shape index: {}]
  %s1 = inlined_call_operand.vmem [shape: f32[2,256], index: 1, kind: output, shape index: {}]
  $region1: #{squeeze.1} parent=0
    #allocation0 [shape = 'u8[8192]{0}', space=vmem, size = 0x2000, scoped, tag = 'scoped mem for output reshape']
    %v2 = vld [vmem:[%s0] ss:$8 sm:$0xf]
    %vm3 = vcmask 130048
    %4 = vst.msk [vmem:[#allocation0] ss:$8 sm:$0x3] %vm3, %v2
    %s5 = scalar_lea.vmem [#allocation0], 4294967281
    %6 = vst.msk [vmem:[%s5] ss:$8 sm:$0xc] %vm3, %v2
    %s7 = scalar_lea.vmem %s0, 7
    %s8 = smov 3
    %v9 = vld [vmem:[%s7] ss:$16 sm:%s8]
    %s10 = scalar_lea.vmem %s0, 4294967279
    %s11 = smov 12
    %v12 = vld [vmem:[%s10] ss:$16 sm:%s11]
    %vm13 = vcmask 1043458
    %v14 = vsel %vm13, %v12, %v9
    %15 = vrot.lane.b32.xlu0 %v14, 112
    %v16 = vpop.permute.xlu0 %15
    %vm17 = vcmask 1048448
    %18 = vst.msk [vmem:[#allocation0] sm:$0x3] %vm17, %v16
    %s19 = scalar_lea.vmem [#allocation0], 6
    %20 = vst.msk [vmem:[%s19] sm:$0xc] %vm17, %v16
    %s21 = scalar_lea.vmem %s0, 6
    %s22 = smov 3
    %v23 = vld [vmem:[%s21] ss:$16 sm:%s22]
    %s24 = scalar_lea.vmem %s0, 4294967278
    %s25 = smov 12
    %v26 = vld [vmem:[%s24] ss:$16 sm:%s25]
    %vm27 = vcmask 1043458
    %v28 = vsel %vm27, %v26, %v23
    %29 = vrot.lane.b32.xlu0 %v28, 96
    %v30 = vpop.permute.xlu0 %29
    %vm31 = vcmask 917248
    %32 = vst.msk [vmem:[#allocation0] sm:$0x3] %vm31, %v30
    %s33 = scalar_lea.vmem [#allocation0], 6
    %34 = vst.msk [vmem:[%s33] sm:$0xc] %vm31, %v30
    %s35 = scalar_lea.vmem %s0, 5
    %s36 = smov 3
    %v37 = vld [vmem:[%s35] ss:$16 sm:%s36]
    %s38 = scalar_lea.vmem %s0, 4294967277
    %s39 = smov 12
    %v40 = vld [vmem:[%s38] ss:$16 sm:%s39]
    %vm41 = vcmask 1043458
    %v42 = vsel %vm41, %v40, %v37
    %43 = vrot.lane.b32.xlu0 %v42, 80
    %v44 = vpop.permute.xlu0 %43
    %vm45 = vcmask 786048
    %46 = vst.msk [vmem:[#allocation0] sm:$0x3] %vm45, %v44
    %s47 = scalar_lea.vmem [#allocation0], 6
    %48 = vst.msk [vmem:[%s47] sm:$0xc] %vm45, %v44
    %s49 = scalar_lea.vmem %s0, 4
    %s50 = smov 3
    %v51 = vld [vmem:[%s49] ss:$16 sm:%s50]
    %s52 = scalar_lea.vmem %s0, 4294967276
    %s53 = smov 12
    %v54 = vld [vmem:[%s52] ss:$16 sm:%s53]
    %vm55 = vcmask 1043458
    %v56 = vsel %vm55, %v54, %v51
    %57 = vrot.lane.b32.xlu0 %v56, 64
    %v58 = vpop.permute.xlu0 %57
    %vm59 = vcmask 654848
    %60 = vst.msk [vmem:[#allocation0] sm:$0x3] %vm59, %v58
    %s61 = scalar_lea.vmem [#allocation0], 6
    %62 = vst.msk [vmem:[%s61] sm:$0xc] %vm59, %v58
    %s63 = scalar_lea.vmem %s0, 3
    %s64 = smov 3
    %v65 = vld [vmem:[%s63] ss:$16 sm:%s64]
    %s66 = scalar_lea.vmem %s0, 4294967275
    %s67 = smov 12
    %v68 = vld [vmem:[%s66] ss:$16 sm:%s67]
    %vm69 = vcmask 1043458
    %v70 = vsel %vm69, %v68, %v65
    %71 = vrot.lane.b32.xlu0 %v70, 48
    %v72 = vpop.permute.xlu0 %71
    %vm73 = vcmask 523648
    %74 = vst.msk [vmem:[#allocation0] sm:$0x3] %vm73, %v72
    %s75 = scalar_lea.vmem [#allocation0], 6
    %76 = vst.msk [vmem:[%s75] sm:$0xc] %vm73, %v72
    %s77 = scalar_lea.vmem %s0, 2
    %s78 = smov 3
    %v79 = vld [vmem:[%s77] ss:$16 sm:%s78]
    %s80 = scalar_lea.vmem %s0, 4294967274
    %s81 = smov 12
    %v82 = vld [vmem:[%s80] ss:$16 sm:%s81]
    %vm83 = vcmask 1043458
    %v84 = vsel %vm83, %v82, %v79
    %85 = vrot.lane.b32.xlu0 %v84, 32
    %v86 = vpop.permute.xlu0 %85
    %vm87 = vcmask 392448
    %88 = vst.msk [vmem:[#allocation0] sm:$0x3] %vm87, %v86
    %s89 = scalar_lea.vmem [#allocation0], 6
    %90 = vst.msk [vmem:[%s89] sm:$0xc] %vm87, %v86
    %s91 = scalar_lea.vmem %s0, 1
    %s92 = smov 3
    %v93 = vld [vmem:[%s91] ss:$16 sm:%s92]
    %s94 = scalar_lea.vmem %s0, 4294967273
    %s95 = smov 12
    %v96 = vld [vmem:[%s94] ss:$16 sm:%s95]
    %vm97 = vcmask 1043458
    %v98 = vsel %vm97, %v96, %v93
    %99 = vrot.lane.b32.xlu0 %v98, 16
    %v100 = vpop.permute.xlu0 %99
    %vm101 = vcmask 261248
    %102 = vst.msk [vmem:[#allocation0] sm:$0x3] %vm101, %v100
    %s103 = scalar_lea.vmem [#allocation0], 6
    %104 = vst.msk [vmem:[%s103] sm:$0xc] %vm101, %v100
    %s106 = ssub.s32 4, 1
    %v107 = vld [vmem:[#allocation0] sm:%s106]
    %s109 = ssub.s32 4, 1
    %110 = vst [vmem:[%s1] sm:%s109] %v107
    %s111 = scalar_lea.vmem [#allocation0], 8
    %v112 = vld [vmem:[%s111] sm:%s106]
    %s114 = ssub.s32 4, 1
    %s115 = scalar_lea.vmem %s1, 2
    %116 = vst [vmem:[%s115] sm:%s114] %v112

// kernel: quantum_circuit_features.2
$region0: #{quantum_circuit_features.2}
  #allocation0 [shape = 'u32[]', space=smem, size = 0x4, offset = 0x4, fixed_abs, tag = 'smem constant byte address 0x4 - core index']
  #allocation1 [shape = 'u32[72,128]{1,0:T(1,128)}', space=vmem, size = 0x9000, scoped, tag = 'internal scratch']
  %s0 = inlined_call_operand.vmem [shape: f32[2,16,128], index: 0, kind: input, shape index: {}]
  %s1 = inlined_call_operand.vmem [shape: f32[2,40,128], index: 1, kind: output, shape index: {}]
  %s2 = sld [smem:[#allocation0]]
  $region79: #{quantum_circuit_features.2} parent=0
    _
  %s4 = ssub.s32 1, %s2
  %s5 = scalar_select 0, %s4, %s2
  $region1: #{quantum_circuit_features.2} parent=0
    #allocation2 [shape = 'u8[16384]{0}', space=vmem, size = 0x4000, scoped, tag = 'input window, operand 0']
    loop: start=0, step=1, limit=4
    $region2: #{quantum_circuit_features.2} parent=1 // loop_pre_header
      _
    $region3: #{quantum_circuit_features.2} parent=1 // loop_header
      %s7 = sphi 0, %s11
      %p8 = scmp.ge.s32.totalorder %s7, 4
      %s14 = sphi 0, %s26
      %s15 = sphi 0, %s22
      %s16 = sphi 0, %s14
      %s17 = sphi 0, %s15
      %s18 = sphi 0, %s16
      %s19 = sphi 0, %s17
      %s31 = sphi 0, %s33
      %s34 = sphi 0, %s31
      %s35 = sphi 0, %s34
      %s51 = sphi 0, %s35
      %s57 = sphi 0, %s59
      %s60 = sphi 0, %s57
      %s61 = sphi 0, %s60
      %s77 = sphi 0, %s61
    $region4: #{quantum_circuit_features.2} parent=1 // loop_header_branch
      %10 = sbr.rel (%p8) target = $region8
    $region5: #{quantum_circuit_features.2} parent=1 // loop_body
      %s12 = ssub.s32 %s7, 1
      %s13 = ssub.s32 %s7, 2
      %s20 = sadd.s32 1, %s15
      %p21 = scmp.ge.s32.totalorder %s20, 1
      %s22 = scalar_select %p21, 0, %s20
      %s23 = sadd.s32 1, %s14
      %s24 = scalar_select %p21, %s23, %s14
      %p25 = scmp.ge.s32.totalorder %s24, 2
      %s26 = scalar_select %p25, 0, %s24
      %s27 = sadd.s32 %s14, %s15
      %s28 = sadd.s32 %s26, %s22
      %s29 = ssub.s32 %s27, %s28
      %p30 = scmp.eq.s32.totalorder %s29, 0
      %s32 = sadd.s32 %s31, 1
      %s33 = scalar_select %p30, %s31, %s32
      %p36 = pneg %p30
      %p37 = scmp.eq.s32.totalorder %s7, 1
      %p38 = por %p36, %p37
      %p39 = scmp.ne.s32.totalorder %s31, %s34
      %p40 = scmp.eq.s32.totalorder %s7, 0
      %p41 = por %p39, %p40
      %p42 = scmp.ne.s32.totalorder %s31, %s34
      %p43 = scmp.eq.s32.totalorder %s12, 1
      %p44 = por %p42, %p43
      %p45 = scmp.ne.s32.totalorder %s34, %s35
      %p46 = scmp.eq.s32.totalorder %s12, 0
      %p47 = por %p45, %p46
      %p48 = scmp.ne.s32.totalorder %s34, %s35
      %p49 = scmp.eq.s32.totalorder %s13, 1
      %p50 = por %p48, %p49
      %p52 = scmp.ne.s32.totalorder %s35, %s51
      %p53 = scmp.eq.s32.totalorder %s13, 0
      %p54 = por %p52, %p53
      %s55 = ssub.s32 %s14, %s26
      %p56 = scmp.eq.s32.totalorder %s55, 0
      %s58 = sadd.s32 %s57, 1
      %s59 = scalar_select %p56, %s57, %s58
      %p62 = pneg %p56
      %p63 = scmp.eq.s32.totalorder %s7, 1
      %p64 = por %p62, %p63
      %p65 = scmp.ne.s32.totalorder %s57, %s60
      %p66 = scmp.eq.s32.totalorder %s7, 0
      %p67 = por %p65, %p66
      %p68 = scmp.ne.s32.totalorder %s57, %s60
      %p69 = scmp.eq.s32.totalorder %s12, 1
      %p70 = por %p68, %p69
      %p71 = scmp.ne.s32.totalorder %s60, %s61
      %p72 = scmp.eq.s32.totalorder %s12, 0
      %p73 = por %p71, %p72
      %p74 = scmp.ne.s32.totalorder %s60, %s61
      %p75 = scmp.eq.s32.totalorder %s13, 1
      %p76 = por %p74, %p75
      %p78 = scmp.ne.s32.totalorder %s61, %s77
      %p79 = scmp.eq.s32.totalorder %s13, 0
      %p80 = por %p78, %p79
      %p81 = scmp.le.s32.totalorder 1, %s7
      %p82 = scmp.lt.s32.totalorder %s7, 3
      %p83 = pnand %p81, %p82
      %p84 = pneg %p83
      // Predicated region
      $region9: #{quantum_circuit_features.2} parent=5 // pred_check
        _
      $region10: #{quantum_circuit_features.2} parent=5 // pred_check_branch
        %86 = sbr.rel (%p83) target = $region12
      $region11: #{quantum_circuit_features.2} parent=5 // pred_region
        %s87 = ssub.s32 %s7, 1
      $region12: #{quantum_circuit_features.2} parent=5 // pred_fallthru
        _
      %p88 = scmp.lt.s32.totalorder %s7, 2
      // Predicated region
      $region13: #{quantum_circuit_features.2} parent=5 // pred_check
        %p89 = pneg %p88
      $region14: #{quantum_circuit_features.2} parent=5 // pred_check_branch
        %91 = sbr.rel (%p89) target = $region16
      $region15: #{quantum_circuit_features.2} parent=5 // pred_region
        // Predicated region
        $region17: #{quantum_circuit_features.2} parent=15 // pred_check
          %p92 = pneg %p41
        $region18: #{quantum_circuit_features.2} parent=15 // pred_check_branch
          %94 = sbr.rel (%p92) target = $region20
        $region19: #{quantum_circuit_features.2} parent=15 // pred_region
          %s95 = sand.u32 %s31, 1
          %s96 = sand.u32 %s31, 1
          %s97 = smul.addr %s96, 16
          %s98 = scalar_lea.vmem [#allocation2], %s97
          %s99 = sadd.s32 %s14, %s15
          %s100 = smul.addr %s99, 8
          %s101 = scalar_lea.vmem %s0, %s100
          // Predicated region
          $region21: #{quantum_circuit_features.2} parent=19 // pred_check
            _
          $region22: #{quantum_circuit_features.2} parent=19 // pred_check_branch
            %103 = sbr.rel (0) target = $region24
          $region23: #{quantum_circuit_features.2} parent=19 // pred_region
            // Predicated region
            $region25: #{quantum_circuit_features.2} parent=23 // pred_check
              _
            $region26: #{quantum_circuit_features.2} parent=23 // pred_check_branch
              %105 = sbr.rel (0) target = $region28
            $region27: #{quantum_circuit_features.2} parent=23 // pred_region
              // Predicated region
              $region40: #{quantum_circuit_features.2} parent=27 // pred_check
                _
              $region41: #{quantum_circuit_features.2} parent=27 // pred_check_branch
                %123 = sbr.rel (0) target = $region43
              $region42: #{quantum_circuit_features.2} parent=27 // pred_region
                loop: start=0, step=1, limit=1
                $region44: #{quantum_circuit_features.2} parent=42 // loop_pre_header
                  _
                $region45: #{quantum_circuit_features.2} parent=42 // loop_header
                  %s125 = sphi 0, %s129
                  %p126 = scmp.ge.s32.totalorder %s125, 1
                  %s130 = sphi %s101, %s101
                  %s131 = sphi %s98, %s98
                $region46: #{quantum_circuit_features.2} parent=42 // loop_header_branch
                  %128 = sbr.rel (%p126) target = $region50
                $region47: #{quantum_circuit_features.2} parent=42 // loop_body
                  %v132 = vld [vmem:[%s130] sm:$0xff]
                  %133 = vst [vmem:[%s131] sm:$0xff] %v132
                  %v134 = vld [vmem:[%s130 + $0x10] sm:$0xff]
                  %135 = vst [vmem:[%s131 + $0x8] sm:$0xff] %v134
                $region48: #{quantum_circuit_features.2} parent=42 // loop_footer
                  %s129 = sadd.s32 1, %s125
                $region49: #{quantum_circuit_features.2} parent=42 // loop_footer_branch
                  %124 = sbr.rel target = $region45
                $region50: #{quantum_circuit_features.2} parent=42 // loop_exit
                  _
              $region43: #{quantum_circuit_features.2} parent=27 // pred_fallthru
                _
              // Predicated region
              $region51: #{quantum_circuit_features.2} parent=27 // pred_check
                _
              $region52: #{quantum_circuit_features.2} parent=27 // pred_check_branch
                %137 = sbr.rel target = $region54
              $region53: #{quantum_circuit_features.2} parent=27 // pred_region
                _
              $region54: #{quantum_circuit_features.2} parent=27 // pred_fallthru
                _
            $region28: #{quantum_circuit_features.2} parent=23 // pred_fallthru
              _
            // Predicated region
            $region29: #{quantum_circuit_features.2} parent=23 // pred_check
              _
            $region30: #{quantum_circuit_features.2} parent=23 // pred_check_branch
              %107 = sbr.rel target = $region32
            $region31: #{quantum_circuit_features.2} parent=23 // pred_region
              %s109 = ssub.s32 256, 1
              loop: start=0, step=1, limit=1
              $region33: #{quantum_circuit_features.2} parent=31 // loop_pre_header
                _
              $region34: #{quantum_circuit_features.2} parent=31 // loop_header
                %s111 = sphi 0, %s115
                %p112 = scmp.ge.s32.totalorder %s111, 1
                %s116 = sphi %s101, %s101
                %s117 = sphi %s98, %s98
              $region35: #{quantum_circuit_features.2} parent=31 // loop_header_branch
                %114 = sbr.rel (%p112) target = $region39
              $region36: #{quantum_circuit_features.2} parent=31 // loop_body
                %v118 = vld [vmem:[%s116] sm:%s109]
                %119 = vst [vmem:[%s117] sm:%s109] %v118
                %v120 = vld [vmem:[%s116 + $0x10] sm:%s109]
                %121 = vst [vmem:[%s117 + $0x8] sm:%s109] %v120
              $region37: #{quantum_circuit_features.2} parent=31 // loop_footer
                %s115 = sadd.s32 1, %s111
              $region38: #{quantum_circuit_features.2} parent=31 // loop_footer_branch
                %110 = sbr.rel target = $region34
              $region39: #{quantum_circuit_features.2} parent=31 // loop_exit
                _
            $region32: #{quantum_circuit_features.2} parent=23 // pred_fallthru
              _
          $region24: #{quantum_circuit_features.2} parent=19 // pred_fallthru
            _
          %138 = vnop
        $region20: #{quantum_circuit_features.2} parent=15 // pred_fallthru
          _
      $region16: #{quantum_circuit_features.2} parent=5 // pred_fallthru
        _
      %p139 = scmp.le.s32.totalorder 1, %s7
      %p140 = scmp.lt.s32.totalorder %s7, 3
      %p141 = pnand %p139, %p140
      %p142 = pneg %p141
      // Predicated region
      $region55: #{quantum_circuit_features.2} parent=5 // pred_check
        _
      $region56: #{quantum_circuit_features.2} parent=5 // pred_check_branch
        %144 = sbr.rel (%p141) target = $region58
      $region57: #{quantum_circuit_features.2} parent=5 // pred_region
        %s145 = ssub.s32 %s7, 1
        %s146 = sand.u32 %s34, 1
        %s147 = sand.u32 %s34, 1
        %s148 = smul.addr %s147, 16
        %s149 = scalar_lea.vmem [#allocation2], %s148
        // Predicated region
        $region59: #{quantum_circuit_features.2} parent=57 // pred_check
          %p150 = pneg %p47
        $region60: #{quantum_circuit_features.2} parent=57 // pred_check_branch
          %152 = sbr.rel (%p150) target = $region62
        $region61: #{quantum_circuit_features.2} parent=57 // pred_region
          _
        $region62: #{quantum_circuit_features.2} parent=57 // pred_fallthru
          _
        %s153 = sand.u32 %s34, 1
        %s154 = sand.u32 %s34, 1
        %s155 = smul.addr %s154, 16
        %s156 = scalar_lea.vmem [#allocation2], %s155
        %p157 = pneg %p47
        %p158 = pneg %p44
        %p159 = pneg %p73
        %p160 = pneg %p70
        %p161 = scmp.lt.s32.totalorder %s16, 1
        %s162 = scalar_select %p161, %s16, 1
        %s163 = smul.addr %s162, 5
        %s164 = smul.addr %s163, 8
        %s165 = scalar_lea.vmem %s1, %s164
        %s166 = sadd.s32 %s16, %s17
        %p167 = scmp.lt.s32.totalorder %s16, 1
        %s168 = scalar_select %p167, %s16, 1
        %s169 = smul.addr %s168, 5
        %s170 = smul.addr %s169, 8
        %s171 = scalar_lea.vmem %s1, %s170
        %p172 = scmp.eq.s32.totalorder %s17, 0
        // Predicated region
        $region63: #{quantum_circuit_features.2} parent=57 // pred_check
          %p173 = pneg %p172
        $region64: #{quantum_circuit_features.2} parent=57 // pred_check_branch
          %175 = sbr.rel (%p173) target = $region66
        $region65: #{quantum_circuit_features.2} parent=57 // pred_region
          %176 = vst [vmem:[%s171] sm:$0xff] 0.0
          %177 = vst [vmem:[%s171 + $0x8] sm:$0xff] 0.0
          %178 = vst [vmem:[%s171 + $0x10] sm:$0xff] 0.0
          %179 = vst [vmem:[%s171 + $0x18] sm:$0xff] 0.0
          %180 = vst [vmem:[%s171 + $0x20] sm:$0xff] 0.0
        $region66: #{quantum_circuit_features.2} parent=57 // pred_fallthru
          _
        %v181 = vld [vmem:[%s149] sm:$0xff]
        %s182 = sadd.s32 0, 8
        %s183 = scalar_lea.vmem %s149, %s182 [#allocation2]
        %v184 = vld [vmem:[%s183] sm:$0xff]
        %v185 = vadd.f32 %v181, 0.0
        %v186 = vadd.f32 %v184, 0.0
        %v187 = vmul.f32 %v181, %v181
        %v188 = vadd.f32 %v187, 0.0
        %v189 = vmul.f32 %v181, %v184
        %v190 = vadd.f32 %v189, 0.0
        %v191 = vmul.f32 %v184, %v184
        %v192 = vadd.f32 %v191, 0.0
        %v193 = vld [vmem:[%s171] sm:$0xff]
        %v194 = vld [vmem:[%s171 + $0x8] sm:$0xff]
        %v195 = vld [vmem:[%s171 + $0x10] sm:$0xff]
        %v196 = vld [vmem:[%s171 + $0x18] sm:$0xff]
        %v197 = vld [vmem:[%s171 + $0x20] sm:$0xff]
        %v198 = vadd.f32 %v193, %v185
        %v199 = vadd.f32 %v194, %v186
        %v200 = vadd.f32 %v195, %v188
        %v201 = vadd.f32 %v196, %v190
        %v202 = vadd.f32 %v197, %v192
        %203 = vst [vmem:[%s171] sm:$0xff] %v198
        %204 = vst [vmem:[%s171 + $0x8] sm:$0xff] %v199
        %205 = vst [vmem:[%s171 + $0x10] sm:$0xff] %v200
        %206 = vst [vmem:[%s171 + $0x18] sm:$0xff] %v201
        %207 = vst [vmem:[%s171 + $0x20] sm:$0xff] %v202
        %p208 = scmp.lt.s32.totalorder %s16, 1
        %s209 = scalar_select %p208, %s16, 1
        %s210 = smul.addr %s209, 5
        %s211 = smul.addr %s210, 8
        %s212 = scalar_lea.vmem %s1, %s211
        // Predicated region
        $region67: #{quantum_circuit_features.2} parent=57 // pred_check
          %p213 = pneg %p70
        $region68: #{quantum_circuit_features.2} parent=57 // pred_check_branch
          %215 = sbr.rel (%p213) target = $region70
        $region69: #{quantum_circuit_features.2} parent=57 // pred_region
          _
        $region70: #{quantum_circuit_features.2} parent=57 // pred_fallthru
          _
      $region58: #{quantum_circuit_features.2} parent=5 // pred_fallthru
        _
      %p216 = scmp.le.s32.totalorder 2, %s7
      // Predicated region
      $region71: #{quantum_circuit_features.2} parent=5 // pred_check
        %p217 = pneg %p216
      $region72: #{quantum_circuit_features.2} parent=5 // pred_check_branch
        %219 = sbr.rel (%p217) target = $region74
      $region73: #{quantum_circuit_features.2} parent=5 // pred_region
        %s220 = ssub.s32 %s7, 2
        // Predicated region
        $region75: #{quantum_circuit_features.2} parent=73 // pred_check
          %p221 = pneg %p76
        $region76: #{quantum_circuit_features.2} parent=73 // pred_check_branch
          %223 = sbr.rel (%p221) target = $region78
        $region77: #{quantum_circuit_features.2} parent=73 // pred_region
          %p224 = scmp.lt.s32.totalorder %s18, 1
          %s225 = scalar_select %p224, %s18, 1
          %s226 = smul.addr %s225, 5
          %s227 = smul.addr %s226, 8
          %s228 = scalar_lea.vmem %s1, %s227
        $region78: #{quantum_circuit_features.2} parent=73 // pred_fallthru
          _
      $region74: #{quantum_circuit_features.2} parent=5 // pred_fallthru
        _
    $region6: #{quantum_circuit_features.2} parent=1 // loop_footer
      %s11 = sadd.s32 1, %s7
    $region7: #{quantum_circuit_features.2} parent=1 // loop_footer_branch
      %6 = sbr.rel target = $region3
    $region8: #{quantum_circuit_features.2} parent=1 // loop_exit
      _

// kernel: quantum_circuit_features.3
$region0: #{quantum_circuit_features.3}
  #allocation0 [shape = 'u32[]', space=smem, size = 0x4, offset = 0x4, fixed_abs, tag = 'smem constant byte address 0x4 - core index']
  #allocation1 [shape = 'u32[72,128]{1,0:T(1,128)}', space=vmem, size = 0x9000, scoped, tag = 'internal scratch']
  %s0 = inlined_call_operand.vmem [shape: f32[4,54], index: 0, kind: input, shape index: {}]
  %s1 = inlined_call_operand.vmem [shape: f32[2,16,128], index: 1, kind: input, shape index: {}]
  %s2 = inlined_call_operand.vmem [shape: f32[4,16,128], index: 2, kind: output, shape index: {}]
  %s3 = sld [smem:[#allocation0]]
  $region83: #{quantum_circuit_features.3} parent=0
    _
  %s5 = ssub.s32 1, %s3
  %s6 = scalar_select 0, %s5, %s3
  $region1: #{quantum_circuit_features.3} parent=0
    #allocation2 [shape = 'u8[2048]{0}', space=smem, size = 0x800, scoped, tag = 'input window, operand 0, single buffered']
    #allocation3 [shape = 's32[2]{0}', space=sflag, size = 0x8, scoped, tag = 'scoped memory for quantum_circuit_features.3']
    #allocation4 [shape = 'u8[16384]{0}', space=vmem, size = 0x4000, scoped, tag = 'input window, operand 1']
    %7 = vsyncpa [#allocation3], 0
    loop: start=0, step=1, limit=10
    $region2: #{quantum_circuit_features.3} parent=1 // loop_pre_header
      _
    $region3: #{quantum_circuit_features.3} parent=1 // loop_header
      %s9 = sphi 0, %s13
      %p10 = scmp.ge.s32.totalorder %s9, 10
      %s16 = sphi 0, %s28
      %s17 = sphi 0, %s24
      %s18 = sphi 0, %s16
      %s19 = sphi 0, %s17
      %s20 = sphi 0, %s18
      %s21 = sphi 0, %s19
      %s29 = sphi 0, %s29
      %s31 = sphi 0, %s29
      %s32 = sphi 0, %s31
      %s46 = sphi 0, %s32
      %s52 = sphi 0, %s54
      %s55 = sphi 0, %s52
      %s56 = sphi 0, %s55
      %s72 = sphi 0, %s56
      %s80 = sphi 0, %s82
      %s83 = sphi 0, %s80
      %s84 = sphi 0, %s83
      %s100 = sphi 0, %s84
    $region4: #{quantum_circuit_features.3} parent=1 // loop_header_branch
      %12 = sbr.rel (%p10) target = $region8
    $region5: #{quantum_circuit_features.3} parent=1 // loop_body
      %s14 = ssub.s32 %s9, 1
      %s15 = ssub.s32 %s9, 2
      %s22 = sadd.s32 1, %s17
      %p23 = scmp.ge.s32.totalorder %s22, 4
      %s24 = scalar_select %p23, 0, %s22
      %s25 = sadd.s32 1, %s16
      %s26 = scalar_select %p23, %s25, %s16
      %p27 = scmp.ge.s32.totalorder %s26, 2
      %s28 = scalar_select %p27, 0, %s26
      %s30 = sadd.s32 %s29, 1
      %p33 = scmp.eq.s32.totalorder %s9, 7
      %p34 = scmp.ne.s32.totalorder %s29, %s31
      %p35 = scmp.eq.s32.totalorder %s9, 0
      %p36 = por %p34, %p35
      %p37 = scmp.ne.s32.totalorder %s29, %s31
      %p38 = scmp.eq.s32.totalorder %s14, 7
      %p39 = por %p37, %p38
      %p40 = scmp.ne.s32.totalorder %s31, %s32
      %p41 = scmp.eq.s32.totalorder %s14, 0
      %p42 = por %p40, %p41
      %p43 = scmp.ne.s32.totalorder %s31, %s32
      %p44 = scmp.eq.s32.totalorder %s15, 7
      %p45 = por %p43, %p44
      %p47 = scmp.ne.s32.totalorder %s32, %s46
      %p48 = scmp.eq.s32.totalorder %s15, 0
      %p49 = por %p47, %p48
      %s50 = ssub.s32 %s16, %s28
      %p51 = scmp.eq.s32.totalorder %s50, 0
      %s53 = sadd.s32 %s52, 1
      %s54 = scalar_select %p51, %s52, %s53
      %p57 = pneg %p51
      %p58 = scmp.eq.s32.totalorder %s9, 7
      %p59 = por %p57, %p58
      %p60 = scmp.ne.s32.totalorder %s52, %s55
      %p61 = scmp.eq.s32.totalorder %s9, 0
      %p62 = por %p60, %p61
      %p63 = scmp.ne.s32.totalorder %s52, %s55
      %p64 = scmp.eq.s32.totalorder %s14, 7
      %p65 = por %p63, %p64
      %p66 = scmp.ne.s32.totalorder %s55, %s56
      %p67 = scmp.eq.s32.totalorder %s14, 0
      %p68 = por %p66, %p67
      %p69 = scmp.ne.s32.totalorder %s55, %s56
      %p70 = scmp.eq.s32.totalorder %s15, 7
      %p71 = por %p69, %p70
      %p73 = scmp.ne.s32.totalorder %s56, %s72
      %p74 = scmp.eq.s32.totalorder %s15, 0
      %p75 = por %p73, %p74
      %s76 = ssub.s32 %s17, %s24
      %s77 = ssub.s32 %s16, %s28
      %s78 = sor.u32 %s76, %s77
      %p79 = scmp.eq.s32.totalorder %s78, 0
      %s81 = sadd.s32 %s80, 1
      %s82 = scalar_select %p79, %s80, %s81
      %p85 = pneg %p79
      %p86 = scmp.eq.s32.totalorder %s9, 7
      %p87 = por %p85, %p86
      %p88 = scmp.ne.s32.totalorder %s80, %s83
      %p89 = scmp.eq.s32.totalorder %s9, 0
      %p90 = por %p88, %p89
      %p91 = scmp.ne.s32.totalorder %s80, %s83
      %p92 = scmp.eq.s32.totalorder %s14, 7
      %p93 = por %p91, %p92
      %p94 = scmp.ne.s32.totalorder %s83, %s84
      %p95 = scmp.eq.s32.totalorder %s14, 0
      %p96 = por %p94, %p95
      %p97 = scmp.ne.s32.totalorder %s83, %s84
      %p98 = scmp.eq.s32.totalorder %s15, 7
      %p99 = por %p97, %p98
      %p101 = scmp.ne.s32.totalorder %s84, %s100
      %p102 = scmp.eq.s32.totalorder %s15, 0
      %p103 = por %p101, %p102
      %p104 = scmp.le.s32.totalorder 1, %s9
      %p105 = scmp.lt.s32.totalorder %s9, 9
      %p106 = pnand %p104, %p105
      %p107 = pneg %p106
      // Predicated region
      $region9: #{quantum_circuit_features.3} parent=5 // pred_check
        _
      $region10: #{quantum_circuit_features.3} parent=5 // pred_check_branch
        %109 = sbr.rel (%p106) target = $region12
      $region11: #{quantum_circuit_features.3} parent=5 // pred_region
        %s110 = ssub.s32 %s9, 1
        // Predicated region
        $region13: #{quantum_circuit_features.3} parent=11 // pred_check
          %p111 = pneg %p42
        $region14: #{quantum_circuit_features.3} parent=11 // pred_check_branch
          %113 = sbr.rel (%p111) target = $region16
        $region15: #{quantum_circuit_features.3} parent=11 // pred_region
          %115 = vsyncadd [#allocation3], 0
          %s117 = sshll.u32 %s0, 4
          %s118 = int_to_ptr.vmem [resolvable:$true] %s117
          %120 = dma.vmem_to_smem %s118, 64, [#allocation2], [#allocation3]
        $region16: #{quantum_circuit_features.3} parent=11 // pred_fallthru
          _
      $region12: #{quantum_circuit_features.3} parent=5 // pred_fallthru
        _
      %p121 = scmp.lt.s32.totalorder %s9, 8
      // Predicated region
      $region17: #{quantum_circuit_features.3} parent=5 // pred_check
        %p122 = pneg %p121
      $region18: #{quantum_circuit_features.3} parent=5 // pred_check_branch
        %124 = sbr.rel (%p122) target = $region20
      $region19: #{quantum_circuit_features.3} parent=5 // pred_region
        // Predicated region
        $region21: #{quantum_circuit_features.3} parent=19 // pred_check
          %p125 = pneg %p62
        $region22: #{quantum_circuit_features.3} parent=19 // pred_check_branch
          %127 = sbr.rel (%p125) target = $region24
        $region23: #{quantum_circuit_features.3} parent=19 // pred_region
          %s128 = sand.u32 %s52, 1
          %s129 = sand.u32 %s52, 1
          %s130 = smul.addr %s129, 16
          %s131 = scalar_lea.vmem [#allocation4], %s130
          %s132 = smul.addr %s16, 8
          %s133 = scalar_lea.vmem %s1, %s132
          // Predicated region
          $region25: #{quantum_circuit_features.3} parent=23 // pred_check
            _
          $region26: #{quantum_circuit_features.3} parent=23 // pred_check_branch
            %135 = sbr.rel (0) target = $region28
          $region27: #{quantum_circuit_features.3} parent=23 // pred_region
            // Predicated region
            $region29: #{quantum_circuit_features.3} parent=27 // pred_check
              _
            $region30: #{quantum_circuit_features.3} parent=27 // pred_check_branch
              %137 = sbr.rel (0) target = $region32
            $region31: #{quantum_circuit_features.3} parent=27 // pred_region
              // Predicated region
              $region44: #{quantum_circuit_features.3} parent=31 // pred_check
                _
              $region45: #{quantum_circuit_features.3} parent=31 // pred_check_branch
                %155 = sbr.rel (0) target = $region47
              $region46: #{quantum_circuit_features.3} parent=31 // pred_region
                loop: start=0, step=1, limit=1
                $region48: #{quantum_circuit_features.3} parent=46 // loop_pre_header
                  _
                $region49: #{quantum_circuit_features.3} parent=46 // loop_header
                  %s157 = sphi 0, %s161
                  %p158 = scmp.ge.s32.totalorder %s157, 1
                  %s162 = sphi %s133, %s133
                  %s163 = sphi %s131, %s131
                $region50: #{quantum_circuit_features.3} parent=46 // loop_header_branch
                  %160 = sbr.rel (%p158) target = $region54
                $region51: #{quantum_circuit_features.3} parent=46 // loop_body
                  %v164 = vld [vmem:[%s162] sm:$0xff]
                  %165 = vst [vmem:[%s163] sm:$0xff] %v164
                  %v166 = vld [vmem:[%s162 + $0x10] sm:$0xff]
                  %167 = vst [vmem:[%s163 + $0x8] sm:$0xff] %v166
                $region52: #{quantum_circuit_features.3} parent=46 // loop_footer
                  %s161 = sadd.s32 1, %s157
                $region53: #{quantum_circuit_features.3} parent=46 // loop_footer_branch
                  %156 = sbr.rel target = $region49
                $region54: #{quantum_circuit_features.3} parent=46 // loop_exit
                  _
              $region47: #{quantum_circuit_features.3} parent=31 // pred_fallthru
                _
              // Predicated region
              $region55: #{quantum_circuit_features.3} parent=31 // pred_check
                _
              $region56: #{quantum_circuit_features.3} parent=31 // pred_check_branch
                %169 = sbr.rel target = $region58
              $region57: #{quantum_circuit_features.3} parent=31 // pred_region
                _
              $region58: #{quantum_circuit_features.3} parent=31 // pred_fallthru
                _
            $region32: #{quantum_circuit_features.3} parent=27 // pred_fallthru
              _
            // Predicated region
            $region33: #{quantum_circuit_features.3} parent=27 // pred_check
              _
            $region34: #{quantum_circuit_features.3} parent=27 // pred_check_branch
              %139 = sbr.rel target = $region36
            $region35: #{quantum_circuit_features.3} parent=27 // pred_region
              %s141 = ssub.s32 256, 1
              loop: start=0, step=1, limit=1
              $region37: #{quantum_circuit_features.3} parent=35 // loop_pre_header
                _
              $region38: #{quantum_circuit_features.3} parent=35 // loop_header
                %s143 = sphi 0, %s147
                %p144 = scmp.ge.s32.totalorder %s143, 1
                %s148 = sphi %s133, %s133
                %s149 = sphi %s131, %s131
              $region39: #{quantum_circuit_features.3} parent=35 // loop_header_branch
                %146 = sbr.rel (%p144) target = $region43
              $region40: #{quantum_circuit_features.3} parent=35 // loop_body
                %v150 = vld [vmem:[%s148] sm:%s141]
                %151 = vst [vmem:[%s149] sm:%s141] %v150
                %v152 = vld [vmem:[%s148 + $0x10] sm:%s141]
                %153 = vst [vmem:[%s149 + $0x8] sm:%s141] %v152
              $region41: #{quantum_circuit_features.3} parent=35 // loop_footer
                %s147 = sadd.s32 1, %s143
              $region42: #{quantum_circuit_features.3} parent=35 // loop_footer_branch
                %142 = sbr.rel target = $region38
              $region43: #{quantum_circuit_features.3} parent=35 // loop_exit
                _
            $region36: #{quantum_circuit_features.3} parent=27 // pred_fallthru
              _
          $region28: #{quantum_circuit_features.3} parent=23 // pred_fallthru
            _
          %170 = vnop
        $region24: #{quantum_circuit_features.3} parent=19 // pred_fallthru
          _
      $region20: #{quantum_circuit_features.3} parent=5 // pred_fallthru
        _
      %p171 = scmp.le.s32.totalorder 1, %s9
      %p172 = scmp.lt.s32.totalorder %s9, 9
      %p173 = pnand %p171, %p172
      %p174 = pneg %p173
      // Predicated region
      $region59: #{quantum_circuit_features.3} parent=5 // pred_check
        _
      $region60: #{quantum_circuit_features.3} parent=5 // pred_check_branch
        %176 = sbr.rel (%p173) target = $region62
      $region61: #{quantum_circuit_features.3} parent=5 // pred_region
        %s177 = ssub.s32 %s9, 1
        // Predicated region
        $region63: #{quantum_circuit_features.3} parent=61 // pred_check
          %p178 = pneg %p42
        $region64: #{quantum_circuit_features.3} parent=61 // pred_check_branch
          %180 = sbr.rel (%p178) target = $region66
        $region65: #{quantum_circuit_features.3} parent=61 // pred_region
          %182 = dma.done [#allocation3], 64
        $region66: #{quantum_circuit_features.3} parent=61 // pred_fallthru
          _
        %s183 = sand.u32 %s55, 1
        %s184 = sand.u32 %s55, 1
        %s185 = smul.addr %s184, 16
        %s186 = scalar_lea.vmem [#allocation4], %s185
        // Predicated region
        $region67: #{quantum_circuit_features.3} parent=61 // pred_check
          %p187 = pneg %p68
        $region68: #{quantum_circuit_features.3} parent=61 // pred_check_branch
          %189 = sbr.rel (%p187) target = $region70
        $region69: #{quantum_circuit_features.3} parent=61 // pred_region
          _
        $region70: #{quantum_circuit_features.3} parent=61 // pred_fallthru
          _
        %190 = sfence
        %p191 = pneg %p42
        %p192 = pneg %p39
        %s193 = sand.u32 %s55, 1
        %s194 = sand.u32 %s55, 1
        %s195 = smul.addr %s194, 16
        %s196 = scalar_lea.vmem [#allocation4], %s195
        %p197 = pneg %p68
        %p198 = pneg %p65
        %p199 = pneg %p96
        %p200 = pneg %p93
        %p201 = scmp.lt.s32.totalorder %s19, 3
        %s202 = scalar_select %p201, %s19, 3
        %p203 = scmp.lt.s32.totalorder %s18, 1
        %s204 = scalar_select %p203, %s18, 1
        %s205 = smul.addr %s202, 2
        %s206 = sadd.s32 %s204, %s205
        %s207 = smul.addr %s206, 8
        %s208 = scalar_lea.vmem %s2, %s207
        %p209 = scmp.lt.s32.totalorder %s19, 3
        %s210 = scalar_select %p209, %s19, 3
        %p211 = scmp.lt.s32.totalorder %s18, 1
        %s212 = scalar_select %p211, %s18, 1
        %s213 = smul.addr %s210, 2
        %s214 = sadd.s32 %s212, %s213
        %s215 = smul.addr %s214, 8
        %s216 = scalar_lea.vmem %s2, %s215
        %s217 = smul.u32 %s19, 128
        %s218 = sadd.s32 %s217, 48
        %s219 = sld [smem:[#allocation2 + %s218]]
        %s220 = sadd.s32 %s217, 49
        %s221 = sld [smem:[#allocation2 + %s220]]
        %s222 = sadd.s32 %s217, 50
        %s223 = sld [smem:[#allocation2 + %s222]]
        %s224 = sadd.s32 %s217, 51
        %s225 = sld [smem:[#allocation2 + %s224]]
        %s226 = sadd.s32 %s217, 52
        %s227 = sld [smem:[#allocation2 + %s226]]
        %s228 = sadd.s32 %s217, 53
        %s229 = sld [smem:[#allocation2 + %s228]]
        %s230 = sld [smem:[#allocation2 + %s217]]
        %s231 = sadd.s32 %s217, 1
        %s232 = sld [smem:[#allocation2 + %s231]]
        %s233 = sadd.s32 %s217, 2
        %s234 = sld [smem:[#allocation2 + %s233]]
        %s235 = sadd.s32 %s217, 3
        %s236 = sld [smem:[#allocation2 + %s235]]
        %s237 = sadd.s32 %s217, 4
        %s238 = sld [smem:[#allocation2 + %s237]]
        %s239 = sadd.s32 %s217, 5
        %s240 = sld [smem:[#allocation2 + %s239]]
        %s241 = sadd.s32 %s217, 6
        %s242 = sld [smem:[#allocation2 + %s241]]
        %s243 = sadd.s32 %s217, 7
        %s244 = sld [smem:[#allocation2 + %s243]]
        %s245 = sadd.s32 %s217, 8
        %s246 = sld [smem:[#allocation2 + %s245]]
        %s247 = sadd.s32 %s217, 9
        %s248 = sld [smem:[#allocation2 + %s247]]
        %s249 = sadd.s32 %s217, 10
        %s250 = sld [smem:[#allocation2 + %s249]]
        %s251 = sadd.s32 %s217, 11
        %s252 = sld [smem:[#allocation2 + %s251]]
        %s253 = sadd.s32 %s217, 12
        %s254 = sld [smem:[#allocation2 + %s253]]
        %s255 = sadd.s32 %s217, 13
        %s256 = sld [smem:[#allocation2 + %s255]]
        %s257 = sadd.s32 %s217, 14
        %s258 = sld [smem:[#allocation2 + %s257]]
        %s259 = sadd.s32 %s217, 15
        %s260 = sld [smem:[#allocation2 + %s259]]
        %s261 = sadd.s32 %s217, 16
        %s262 = sld [smem:[#allocation2 + %s261]]
        %s263 = sadd.s32 %s217, 17
        %s264 = sld [smem:[#allocation2 + %s263]]
        %s265 = sadd.s32 %s217, 18
        %s266 = sld [smem:[#allocation2 + %s265]]
        %s267 = sadd.s32 %s217, 19
        %s268 = sld [smem:[#allocation2 + %s267]]
        %s269 = sadd.s32 %s217, 20
        %s270 = sld [smem:[#allocation2 + %s269]]
        %s271 = sadd.s32 %s217, 21
        %s272 = sld [smem:[#allocation2 + %s271]]
        %s273 = sadd.s32 %s217, 22
        %s274 = sld [smem:[#allocation2 + %s273]]
        %s275 = sadd.s32 %s217, 23
        %s276 = sld [smem:[#allocation2 + %s275]]
        %s277 = sadd.s32 %s217, 24
        %s278 = sld [smem:[#allocation2 + %s277]]
        %s279 = sadd.s32 %s217, 25
        %s280 = sld [smem:[#allocation2 + %s279]]
        %s281 = sadd.s32 %s217, 26
        %s282 = sld [smem:[#allocation2 + %s281]]
        %s283 = sadd.s32 %s217, 27
        %s284 = sld [smem:[#allocation2 + %s283]]
        %s285 = sadd.s32 %s217, 28
        %s286 = sld [smem:[#allocation2 + %s285]]
        %s287 = sadd.s32 %s217, 29
        %s288 = sld [smem:[#allocation2 + %s287]]
        %s289 = sadd.s32 %s217, 30
        %s290 = sld [smem:[#allocation2 + %s289]]
        %s291 = sadd.s32 %s217, 31
        %s292 = sld [smem:[#allocation2 + %s291]]
        %s293 = sadd.s32 %s217, 32
        %s294 = sld [smem:[#allocation2 + %s293]]
        %s295 = sadd.s32 %s217, 33
        %s296 = sld [smem:[#allocation2 + %s295]]
        %s297 = sadd.s32 %s217, 34
        %s298 = sld [smem:[#allocation2 + %s297]]
        %s299 = sadd.s32 %s217, 35
        %s300 = sld [smem:[#allocation2 + %s299]]
        %s301 = sadd.s32 %s217, 36
        %s302 = sld [smem:[#allocation2 + %s301]]
        %s303 = sadd.s32 %s217, 37
        %s304 = sld [smem:[#allocation2 + %s303]]
        %s305 = sadd.s32 %s217, 38
        %s306 = sld [smem:[#allocation2 + %s305]]
        %s307 = sadd.s32 %s217, 39
        %s308 = sld [smem:[#allocation2 + %s307]]
        %s309 = sadd.s32 %s217, 40
        %s310 = sld [smem:[#allocation2 + %s309]]
        %s311 = sadd.s32 %s217, 41
        %s312 = sld [smem:[#allocation2 + %s311]]
        %s313 = sadd.s32 %s217, 42
        %s314 = sld [smem:[#allocation2 + %s313]]
        %s315 = sadd.s32 %s217, 43
        %s316 = sld [smem:[#allocation2 + %s315]]
        %s317 = sadd.s32 %s217, 44
        %s318 = sld [smem:[#allocation2 + %s317]]
        %s319 = sadd.s32 %s217, 45
        %s320 = sld [smem:[#allocation2 + %s319]]
        %s321 = sadd.s32 %s217, 46
        %s322 = sld [smem:[#allocation2 + %s321]]
        %s323 = sadd.s32 %s217, 47
        %s324 = sld [smem:[#allocation2 + %s323]]
        %v325 = vld [vmem:[%s186] sm:$0xff]
        %v326 = vstv %s219
        %v327 = vmul.f32 %v326, %v325
        %v328 = vstv %s227
        %v329 = vadd.f32 %v328, %v327
        %v330 = vstv %s223
        %v331 = vmul.f32 %v330, %v325
        %v332 = vstv %s229
        %v333 = vadd.f32 %v332, %v331
        %s334 = sadd.s32 0, 8
        %s335 = scalar_lea.vmem %s186, %s334 [#allocation4]
        %v336 = vld [vmem:[%s335] sm:$0xff]
        %v337 = vstv %s221
        %v338 = vmul.f32 %v337, %v336
        %v339 = vadd.f32 %v329, %v338
        %v340 = vstv %s225
        %v341 = vmul.f32 %v340, %v336
        %v342 = vadd.f32 %v333, %v341
        %v343 = vadd.f32 %v339, %v342
        %v344 = vmul.f32 %v343, 0.5
        %v345 = vsub.f32 %v339, %v342
        %v346 = vmul.f32 %v345, 0.5
        %v347 = vand.u32 2147483647, %v344
        %vm348 = vcmp.le.f32.partialorder %v347, 0.7853982
        %vm349 = vcmp.lt.s32.totalorder %v344, 0
        %v350 = vand.u32 %v344, 2139095040
        %v351 = vshrl.u32 %v350, 23
        %v352 = vsub.s32 %v351, 127
        %v353 = vand.u32 2147483647, %v344
        %v354 = vand.u32 %v353, 8388607
        %v355 = vor.u32 %v354, 8388608
        %v356 = vsub.s32 0, %v355
        %v357 = vadd.s32 %v352, 1
        %vm358 = vcmp.gt.s32.totalorder %v357, 0
        %v359 = vsel %vm358, %v357, 0
        %v360 = vshrl.u32 %v359, 5
        %v361 = vand.u32 %v359, 31
        %v362 = vsub.s32 32, %v361
        %v363 = vshrl.u32 683565275, %v362
        %v364 = vshll.u32 683565275, %v361
        %v365 = vshrl.u32 2475754826, %v362
        %v366 = vor.u32 %v364, %v365
        %v367 = vshll.u32 2475754826, %v361
        %v368 = vshrl.u32 2131351028, %v362
        %v369 = vor.u32 %v367, %v368
        %v370 = vshll.u32 2131351028, %v361
        %v371 = vshrl.u32 2102212464, %v362
        %v372 = vor.u32 %v370, %v371
        %v373 = vshll.u32 2102212464, %v361
        %v374 = vshrl.u32 920167782, %v362
        %v375 = vor.u32 %v373, %v374
        %v376 = vshll.u32 920167782, %v361
        %v377 = vshrl.u32 1326507024, %v362
        %v378 = vor.u32 %v376, %v377
        %vm379 = vcmp.lt.s32.totalorder %v360, 1
        %vm380 = vcmp.lt.s32.totalorder %v360, 2
        %vm381 = vcmp.lt.s32.totalorder %v360, 3
        %vm382 = vcmp.lt.s32.totalorder %v360, 4
        %v383 = vsel %vm379, %v363, %v366
        %v384 = vsel %vm382, %v372, 2102212464
        %v385 = vsel %vm381, %v369, %v384
        %v386 = vsel %vm380, %v383, %v385
        %v387 = vsel %vm379, %v366, %v369
        %v388 = vsel %vm382, %v375, 920167782
        %v389 = vsel %vm381, %v372, %v388
        %v390 = vsel %vm380, %v387, %v389
        %v391 = vsel %vm379, %v369, %v372
        %v392 = vsel %vm382, %v378, 1326507024
        %v393 = vsel %vm381, %v375, %v392
        %v394 = vsel %vm380, %v391, %v393
        %v395 = vshll.u32 %v355, 8
        %v396 = vand.u32 %v395, 65535
        %v397 = vshrl.u32 %v395, 16
        %v398 = vand.u32 %v394, 65535
        %v399 = vshrl.u32 %v394, 16
        %v400 = vmul.u32 %v396, %v398
        %v401 = vmul.u32 %v396, %v399
        %v402 = vmul.u32 %v397, %v398
        %v403 = vmul.u32 %v397, %v399
        %v404 = vshll.u32 %v401, 16
        %v405 = vshrl.u32 %v401, 16
        %v406 = vshll.u32 %v402, 16
        %v407 = vshrl.u32 %v402, 16
        %vm408 = vc.u32 %v400, %v404
        %v409 = vsel %vm408, 1, 0
        %v410 = vadd.s32 %v400, %v404
        %v411 = vadd.s32 %v403, %v409
        %vm412 = vc.u32 %v410, %v406
        %v413 = vsel %vm412, 1, 0
        %v414 = vadd.s32 %v410, %v406
        %v415 = vadd.s32 %v411, %v413
        %v416 = vadd.s32 %v415, %v405
        %v417 = vadd.s32 %v416, %v407
        %v418 = vand.u32 %v395, 65535
        %v419 = vshrl.u32 %v395, 16
        %v420 = vand.u32 %v390, 65535
        %v421 = vshrl.u32 %v390, 16
        %v422 = vmul.u32 %v418, %v420
        %v423 = vmul.u32 %v418, %v421
        %v424 = vmul.u32 %v419, %v420
        %v425 = vmul.u32 %v419, %v421
        %v426 = vshll.u32 %v423, 16
        %v427 = vshrl.u32 %v423, 16
        %v428 = vshll.u32 %v424, 16
        %v429 = vshrl.u32 %v424, 16
        %vm430 = vc.u32 %v422, %v426
        %v431 = vsel %vm430, 1, 0
        %v432 = vadd.s32 %v422, %v426
        %v433 = vadd.s32 %v425, %v431
        %vm434 = vc.u32 %v432, %v428
        %v435 = vsel %vm434, 1, 0
        %v436 = vadd.s32 %v432, %v428
        %v437 = vadd.s32 %v433, %v435
        %v438 = vadd.s32 %v437, %v427
        %v439 = vadd.s32 %v438, %v429
        %v440 = vmul.u32 %v395, %v386
        %v441 = vadd.s32 %v417, %v436
        %vm442 = vc.u32 %v417, %v436
        %v443 = vadd.s32 %v439, 1
        %v444 = vsel %vm442, %v443, %v439
        %v445 = vadd.s32 %v440, %v444
        %v446 = vadd.s32 %v445, 536870912
        %v447 = vshrl.u32 %v446, 30
        %v448 = vshll.u32 %v447, 30
        %v449 = vsub.s32 %v445, %v448
        %vm450 = vcmp.lt.s32.totalorder %v449, 0
        %v451 = vsub.s32 0, %v449
        %v452 = vsel %vm450, %v451, %v449
        %v453 = vclz %v452
        %v454 = vsub.s32 %v453, 2
        %vm455 = vcmp.gt.s32.totalorder 0, %v454
        %v456 = vsel %vm455, 0, %v454
        %v457 = vsub.s32 32, %v456
        %v458 = vshll.u32 %v449, %v456
        %v459 = vshrl.u32 %v441, %v457
        %v460 = vor.u32 %v458, %v459
        %v461 = vsub.s32 4294967266, %v456
        %v462 = vadd.s32 %v461, 127
        %v463 = vshll.u32 %v462, 23
        %v464 = vor.u32 4788187, %v463
        %v465 = vand.u32 2147483647, %v464
        %v467 = vcvt.s32.f32 %v460
        %v468 = vmul.f32 %v467, %v465
        %v469 = vxor.u32 %v468, 2147483648
        %v470 = vsel %vm349, %v469, %v468
        %v471 = vsub.s32 4, %v447
        %v472 = vsel %vm349, %v471, %v447
        %v473 = vsel %vm348, %v344, %v470
        %v474 = vsel %vm348, 0, %v472
        %v475 = vmul.f32 %v473, %v473
        %v476 = vmul.f32 %v475, -0.001358992
        %v477 = vadd.f32 %v476, 0.041655596
        %v478 = vmul.f32 %v475, %v477
        %v479 = vadd.f32 %v478, -0.4999988
        %v480 = vmul.f32 %v475, %v479
        %v481 = vadd.f32 1.0, %v480
        %v482 = vmul.f32 %v473, %v473
        %v483 = vmul.f32 %v482, -0.00019511016
        %v484 = vadd.f32 %v483, 0.008332121
        %v485 = vmul.f32 %v482, %v484
        %v486 = vadd.f32 %v485, -0.16666654
        %v487 = vmul.f32 %v482, %v486
        %v488 = vadd.f32 %v487, 1.0
        %v489 = vmul.f32 %v488, %v473
        %vm490 = vweird.f32 %v344
        %v491 = vand.u32 %v474, 3
        %vm492 = vcmp.lt.s32.totalorder %v491, 2
        %vm493 = vcmp.eq.s32.totalorder %v491, 0
        %v494 = vxor.u32 %v489, 2147483648
        %v495 = vsel %vm493, %v481, %v494
        %vm496 = vcmp.eq.s32.totalorder %v491, 2
        %v497 = vxor.u32 %v481, 2147483648
        %v498 = vsel %vm496, %v497, %v489
        %v499 = vsel %vm492, %v495, %v498
        %v500 = vsel %vm490, nan, %v499
        %v501 = vand.u32 2147483647, %v344
        %vm502 = vcmp.le.f32.partialorder %v501, 0.7853982
        %vm503 = vcmp.lt.s32.totalorder %v344, 0
        %v504 = vand.u32 %v344, 2139095040
        %v505 = vshrl.u32 %v504, 23
        %v506 = vsub.s32 %v505, 127
        %v507 = vand.u32 2147483647, %v344
        %v508 = vand.u32 %v507, 8388607
        %v509 = vor.u32 %v508, 8388608
        %v510 = vsub.s32 0, %v509
        %v511 = vadd.s32 %v506, 1
        %vm512 = vcmp.gt.s32.totalorder %v511, 0
        %v513 = vsel %vm512, %v511, 0
        %v514 = vshrl.u32 %v513, 5
        %v515 = vand.u32 %v513, 31
        %v516 = vsub.s32 32, %v515
        %v517 = vshrl.u32 683565275, %v516
        %v518 = vshll.u32 683565275, %v515
        %v519 = vshrl.u32 2475754826, %v516
        %v520 = vor.u32 %v518, %v519
        %v521 = vshll.u32 2475754826, %v515
        %v522 = vshrl.u32 2131351028, %v516
        %v523 = vor.u32 %v521, %v522
        %v524 = vshll.u32 2131351028, %v515
        %v525 = vshrl.u32 2102212464, %v516
        %v526 = vor.u32 %v524, %v525
        %v527 = vshll.u32 2102212464, %v515
        %v528 = vshrl.u32 920167782, %v516
        %v529 = vor.u32 %v527, %v528
        %v530 = vshll.u32 920167782, %v515
        %v531 = vshrl.u32 1326507024, %v516
        %v532 = vor.u32 %v530, %v531
        %vm533 = vcmp.lt.s32.totalorder %v514, 1
        %vm534 = vcmp.lt.s32.totalorder %v514, 2
        %vm535 = vcmp.lt.s32.totalorder %v514, 3
        %vm536 = vcmp.lt.s32.totalorder %v514, 4
        %v537 = vsel %vm533, %v517, %v520
        %v538 = vsel %vm536, %v526, 2102212464
        %v539 = vsel %vm535, %v523, %v538
        %v540 = vsel %vm534, %v537, %v539
        %v541 = vsel %vm533, %v520, %v523
        %v542 = vsel %vm536, %v529, 920167782
        %v543 = vsel %vm535, %v526, %v542
        %v544 = vsel %vm534, %v541, %v543
        %v545 = vsel %vm533, %v523, %v526
        %v546 = vsel %vm536, %v532, 1326507024
        %v547 = vsel %vm535, %v529, %v546
        %v548 = vsel %vm534, %v545, %v547
        %v549 = vshll.u32 %v509, 8
        %v550 = vand.u32 %v549, 65535
        %v551 = vshrl.u32 %v549, 16
        %v552 = vand.u32 %v548, 65535
        %v553 = vshrl.u32 %v548, 16
        %v554 = vmul.u32 %v550, %v552
        %v555 = vmul.u32 %v550, %v553
        %v556 = vmul.u32 %v551, %v552
        %v557 = vmul.u32 %v551, %v553
        %v558 = vshll.u32 %v555, 16
        %v559 = vshrl.u32 %v555, 16
        %v560 = vshll.u32 %v556, 16
        %v561 = vshrl.u32 %v556, 16
        %vm562 = vc.u32 %v554, %v558
        %v563 = vsel %vm562, 1, 0
        %v564 = vadd.s32 %v554, %v558
        %v565 = vadd.s32 %v557, %v563
        %vm566 = vc.u32 %v564, %v560
        %v567 = vsel %vm566, 1, 0
        %v568 = vadd.s32 %v564, %v560
        %v569 = vadd.s32 %v565, %v567
        %v570 = vadd.s32 %v569, %v559
        %v571 = vadd.s32 %v570, %v561
        %v572 = vand.u32 %v549, 65535
        %v573 = vshrl.u32 %v549, 16
        %v574 = vand.u32 %v544, 65535
        %v575 = vshrl.u32 %v544, 16
        %v576 = vmul.u32 %v572, %v574
        %v577 = vmul.u32 %v572, %v575
        %v578 = vmul.u32 %v573, %v574
        %v579 = vmul.u32 %v573, %v575
        %v580 = vshll.u32 %v577, 16
        %v581 = vshrl.u32 %v577, 16
        %v582 = vshll.u32 %v578, 16
        %v583 = vshrl.u32 %v578, 16
        %vm584 = vc.u32 %v576, %v580
        %v585 = vsel %vm584, 1, 0
        %v586 = vadd.s32 %v576, %v580
        %v587 = vadd.s32 %v579, %v585
        %vm588 = vc.u32 %v586, %v582
        %v589 = vsel %vm588, 1, 0
        %v590 = vadd.s32 %v586, %v582
        %v591 = vadd.s32 %v587, %v589
        %v592 = vadd.s32 %v591, %v581
        %v593 = vadd.s32 %v592, %v583
        %v594 = vmul.u32 %v549, %v540
        %v595 = vadd.s32 %v571, %v590
        %vm596 = vc.u32 %v571, %v590
        %v597 = vadd.s32 %v593, 1
        %v598 = vsel %vm596, %v597, %v593
        %v599 = vadd.s32 %v594, %v598
        %v600 = vadd.s32 %v599, 536870912
        %v601 = vshrl.u32 %v600, 30
        %v602 = vshll.u32 %v601, 30
        %v603 = vsub.s32 %v599, %v602
        %vm604 = vcmp.lt.s32.totalorder %v603, 0
        %v605 = vsub.s32 0, %v603
        %v606 = vsel %vm604, %v605, %v603
        %v607 = vclz %v606
        %v608 = vsub.s32 %v607, 2
        %vm609 = vcmp.gt.s32.totalorder 0, %v608
        %v610 = vsel %vm609, 0, %v608
        %v611 = vsub.s32 32, %v610
        %v612 = vshll.u32 %v603, %v610
        %v613 = vshrl.u32 %v595, %v611
        %v614 = vor.u32 %v612, %v613
        %v615 = vsub.s32 4294967266, %v610
        %v616 = vadd.s32 %v615, 127
        %v617 = vshll.u32 %v616, 23
        %v618 = vor.u32 4788187, %v617
        %v619 = vand.u32 2147483647, %v618
        %v621 = vcvt.s32.f32 %v614
        %v622 = vmul.f32 %v621, %v619
        %v623 = vxor.u32 %v622, 2147483648
        %v624 = vsel %vm503, %v623, %v622
        %v625 = vsub.s32 4, %v601
        %v626 = vsel %vm503, %v625, %v601
        %v627 = vsel %vm502, %v344, %v624
        %v628 = vsel %vm502, 0, %v626
        %v629 = vmul.f32 %v627, %v627
        %v630 = vmul.f32 %v629, -0.001358992
        %v631 = vadd.f32 %v630, 0.041655596
        %v632 = vmul.f32 %v629, %v631
        %v633 = vadd.f32 %v632, -0.4999988
        %v634 = vmul.f32 %v629, %v633
        %v635 = vadd.f32 1.0, %v634
        %v636 = vmul.f32 %v627, %v627
        %v637 = vmul.f32 %v636, -0.00019511016
        %v638 = vadd.f32 %v637, 0.008332121
        %v639 = vmul.f32 %v636, %v638
        %v640 = vadd.f32 %v639, -0.16666654
        %v641 = vmul.f32 %v636, %v640
        %v642 = vadd.f32 %v641, 1.0
        %v643 = vmul.f32 %v642, %v627
        %vm644 = vweird.f32 %v344
        %v645 = vadd.s32 %v628, 3
        %v646 = vand.u32 %v645, 3
        %vm647 = vcmp.lt.s32.totalorder %v646, 2
        %vm648 = vcmp.eq.s32.totalorder %v646, 0
        %v649 = vxor.u32 %v643, 2147483648
        %v650 = vsel %vm648, %v635, %v649
        %vm651 = vcmp.eq.s32.totalorder %v646, 2
        %v652 = vxor.u32 %v635, 2147483648
        %v653 = vsel %vm651, %v652, %v643
        %v654 = vsel %vm647, %v650, %v653
        %v655 = vsel %vm644, nan, %v654
        %v656 = vand.u32 2147483647, %v346
        %vm657 = vcmp.le.f32.partialorder %v656, 0.7853982
        %vm658 = vcmp.lt.s32.totalorder %v346, 0
        %v659 = vand.u32 %v346, 2139095040
        %v660 = vshrl.u32 %v659, 23
        %v661 = vsub.s32 %v660, 127
        %v662 = vand.u32 2147483647, %v346
        %v663 = vand.u32 %v662, 8388607
        %v664 = vor.u32 %v663, 8388608
        %v665 = vsub.s32 0, %v664
        %v666 = vadd.s32 %v661, 1
        %vm667 = vcmp.gt.s32.totalorder %v666, 0
        %v668 = vsel %vm667, %v666, 0
        %v669 = vshrl.u32 %v668, 5
        %v670 = vand.u32 %v668, 31
        %v671 = vsub.s32 32, %v670
        %v672 = vshrl.u32 683565275, %v671
        %v673 = vshll.u32 683565275, %v670
        %v674 = vshrl.u32 2475754826, %v671
        %v675 = vor.u32 %v673, %v674
        %v676 = vshll.u32 2475754826, %v670
        %v677 = vshrl.u32 2131351028, %v671
        %v678 = vor.u32 %v676, %v677
        %v679 = vshll.u32 2131351028, %v670
        %v680 = vshrl.u32 2102212464, %v671
        %v681 = vor.u32 %v679, %v680
        %v682 = vshll.u32 2102212464, %v670
        %v683 = vshrl.u32 920167782, %v671
        %v684 = vor.u32 %v682, %v683
        %v685 = vshll.u32 920167782, %v670
        %v686 = vshrl.u32 1326507024, %v671
        %v687 = vor.u32 %v685, %v686
        %vm688 = vcmp.lt.s32.totalorder %v669, 1
        %vm689 = vcmp.lt.s32.totalorder %v669, 2
        %vm690 = vcmp.lt.s32.totalorder %v669, 3
        %vm691 = vcmp.lt.s32.totalorder %v669, 4
        %v692 = vsel %vm688, %v672, %v675
        %v693 = vsel %vm691, %v681, 2102212464
        %v694 = vsel %vm690, %v678, %v693
        %v695 = vsel %vm689, %v692, %v694
        %v696 = vsel %vm688, %v675, %v678
        %v697 = vsel %vm691, %v684, 920167782
        %v698 = vsel %vm690, %v681, %v697
        %v699 = vsel %vm689, %v696, %v698
        %v700 = vsel %vm688, %v678, %v681
        %v701 = vsel %vm691, %v687, 1326507024
        %v702 = vsel %vm690, %v684, %v701
        %v703 = vsel %vm689, %v700, %v702
        %v704 = vshll.u32 %v664, 8
        %v705 = vand.u32 %v704, 65535
        %v706 = vshrl.u32 %v704, 16
        %v707 = vand.u32 %v703, 65535
        %v708 = vshrl.u32 %v703, 16
        %v709 = vmul.u32 %v705, %v707
        %v710 = vmul.u32 %v705, %v708
        %v711 = vmul.u32 %v706, %v707
        %v712 = vmul.u32 %v706, %v708
        %v713 = vshll.u32 %v710, 16
        %v714 = vshrl.u32 %v710, 16
        %v715 = vshll.u32 %v711, 16
        %v716 = vshrl.u32 %v711, 16
        %vm717 = vc.u32 %v709, %v713
        %v718 = vsel %vm717, 1, 0
        %v719 = vadd.s32 %v709, %v713
        %v720 = vadd.s32 %v712, %v718
        %vm721 = vc.u32 %v719, %v715
        %v722 = vsel %vm721, 1, 0
        %v723 = vadd.s32 %v719, %v715
        %v724 = vadd.s32 %v720, %v722
        %v725 = vadd.s32 %v724, %v714
        %v726 = vadd.s32 %v725, %v716
        %v727 = vand.u32 %v704, 65535
        %v728 = vshrl.u32 %v704, 16
        %v729 = vand.u32 %v699, 65535
        %v730 = vshrl.u32 %v699, 16
        %v731 = vmul.u32 %v727, %v729
        %v732 = vmul.u32 %v727, %v730
        %v733 = vmul.u32 %v728, %v729
        %v734 = vmul.u32 %v728, %v730
        %v735 = vshll.u32 %v732, 16
        %v736 = vshrl.u32 %v732, 16
        %v737 = vshll.u32 %v733, 16
        %v738 = vshrl.u32 %v733, 16
        %vm739 = vc.u32 %v731, %v735
        %v740 = vsel %vm739, 1, 0
        %v741 = vadd.s32 %v731, %v735
        %v742 = vadd.s32 %v734, %v740
        %vm743 = vc.u32 %v741, %v737
        %v744 = vsel %vm743, 1, 0
        %v745 = vadd.s32 %v741, %v737
        %v746 = vadd.s32 %v742, %v744
        %v747 = vadd.s32 %v746, %v736
        %v748 = vadd.s32 %v747, %v738
        %v749 = vmul.u32 %v704, %v695
        %v750 = vadd.s32 %v726, %v745
        %vm751 = vc.u32 %v726, %v745
        %v752 = vadd.s32 %v748, 1
        %v753 = vsel %vm751, %v752, %v748
        %v754 = vadd.s32 %v749, %v753
        %v755 = vadd.s32 %v754, 536870912
        %v756 = vshrl.u32 %v755, 30
        %v757 = vshll.u32 %v756, 30
        %v758 = vsub.s32 %v754, %v757
        %vm759 = vcmp.lt.s32.totalorder %v758, 0
        %v760 = vsub.s32 0, %v758
        %v761 = vsel %vm759, %v760, %v758
        %v762 = vclz %v761
        %v763 = vsub.s32 %v762, 2
        %vm764 = vcmp.gt.s32.totalorder 0, %v763
        %v765 = vsel %vm764, 0, %v763
        %v766 = vsub.s32 32, %v765
        %v767 = vshll.u32 %v758, %v765
        %v768 = vshrl.u32 %v750, %v766
        %v769 = vor.u32 %v767, %v768
        %v770 = vsub.s32 4294967266, %v765
        %v771 = vadd.s32 %v770, 127
        %v772 = vshll.u32 %v771, 23
        %v773 = vor.u32 4788187, %v772
        %v774 = vand.u32 2147483647, %v773
        %v776 = vcvt.s32.f32 %v769
        %v777 = vmul.f32 %v776, %v774
        %v778 = vxor.u32 %v777, 2147483648
        %v779 = vsel %vm658, %v778, %v777
        %v780 = vsub.s32 4, %v756
        %v781 = vsel %vm658, %v780, %v756
        %v782 = vsel %vm657, %v346, %v779
        %v783 = vsel %vm657, 0, %v781
        %v784 = vmul.f32 %v782, %v782
        %v785 = vmul.f32 %v784, -0.001358992
        %v786 = vadd.f32 %v785, 0.041655596
        %v787 = vmul.f32 %v784, %v786
        %v788 = vadd.f32 %v787, -0.4999988
        %v789 = vmul.f32 %v784, %v788
        %v790 = vadd.f32 1.0, %v789
        %v791 = vmul.f32 %v782, %v782
        %v792 = vmul.f32 %v791, -0.00019511016
        %v793 = vadd.f32 %v792, 0.008332121
        %v794 = vmul.f32 %v791, %v793
        %v795 = vadd.f32 %v794, -0.16666654
        %v796 = vmul.f32 %v791, %v795
        %v797 = vadd.f32 %v796, 1.0
        %v798 = vmul.f32 %v797, %v782
        %vm799 = vweird.f32 %v346
        %v800 = vand.u32 %v783, 3
        %vm801 = vcmp.lt.s32.totalorder %v800, 2
        %vm802 = vcmp.eq.s32.totalorder %v800, 0
        %v803 = vxor.u32 %v798, 2147483648
        %v804 = vsel %vm802, %v790, %v803
        %vm805 = vcmp.eq.s32.totalorder %v800, 2
        %v806 = vxor.u32 %v790, 2147483648
        %v807 = vsel %vm805, %v806, %v798
        %v808 = vsel %vm801, %v804, %v807
        %v809 = vsel %vm799, nan, %v808
        %v810 = vand.u32 2147483647, %v346
        %vm811 = vcmp.le.f32.partialorder %v810, 0.7853982
        %vm812 = vcmp.lt.s32.totalorder %v346, 0
        %v813 = vand.u32 %v346, 2139095040
        %v814 = vshrl.u32 %v813, 23
        %v815 = vsub.s32 %v814, 127
        %v816 = vand.u32 2147483647, %v346
        %v817 = vand.u32 %v816, 8388607
        %v818 = vor.u32 %v817, 8388608
        %v819 = vsub.s32 0, %v818
        %v820 = vadd.s32 %v815, 1
        %vm821 = vcmp.gt.s32.totalorder %v820, 0
        %v822 = vsel %vm821, %v820, 0
        %v823 = vshrl.u32 %v822, 5
        %v824 = vand.u32 %v822, 31
        %v825 = vsub.s32 32, %v824
        %v826 = vshrl.u32 683565275, %v825
        %v827 = vshll.u32 683565275, %v824
        %v828 = vshrl.u32 2475754826, %v825
        %v829 = vor.u32 %v827, %v828
        %v830 = vshll.u32 2475754826, %v824
        %v831 = vshrl.u32 2131351028, %v825
        %v832 = vor.u32 %v830, %v831
        %v833 = vshll.u32 2131351028, %v824
        %v834 = vshrl.u32 2102212464, %v825
        %v835 = vor.u32 %v833, %v834
        %v836 = vshll.u32 2102212464, %v824
        %v837 = vshrl.u32 920167782, %v825
        %v838 = vor.u32 %v836, %v837
        %v839 = vshll.u32 920167782, %v824
        %v840 = vshrl.u32 1326507024, %v825
        %v841 = vor.u32 %v839, %v840
        %vm842 = vcmp.lt.s32.totalorder %v823, 1
        %vm843 = vcmp.lt.s32.totalorder %v823, 2
        %vm844 = vcmp.lt.s32.totalorder %v823, 3
        %vm845 = vcmp.lt.s32.totalorder %v823, 4
        %v846 = vsel %vm842, %v826, %v829
        %v847 = vsel %vm845, %v835, 2102212464
        %v848 = vsel %vm844, %v832, %v847
        %v849 = vsel %vm843, %v846, %v848
        %v850 = vsel %vm842, %v829, %v832
        %v851 = vsel %vm845, %v838, 920167782
        %v852 = vsel %vm844, %v835, %v851
        %v853 = vsel %vm843, %v850, %v852
        %v854 = vsel %vm842, %v832, %v835
        %v855 = vsel %vm845, %v841, 1326507024
        %v856 = vsel %vm844, %v838, %v855
        %v857 = vsel %vm843, %v854, %v856
        %v858 = vshll.u32 %v818, 8
        %v859 = vand.u32 %v858, 65535
        %v860 = vshrl.u32 %v858, 16
        %v861 = vand.u32 %v857, 65535
        %v862 = vshrl.u32 %v857, 16
        %v863 = vmul.u32 %v859, %v861
        %v864 = vmul.u32 %v859, %v862
        %v865 = vmul.u32 %v860, %v861
        %v866 = vmul.u32 %v860, %v862
        %v867 = vshll.u32 %v864, 16
        %v868 = vshrl.u32 %v864, 16
        %v869 = vshll.u32 %v865, 16
        %v870 = vshrl.u32 %v865, 16
        %vm871 = vc.u32 %v863, %v867
        %v872 = vsel %vm871, 1, 0
        %v873 = vadd.s32 %v863, %v867
        %v874 = vadd.s32 %v866, %v872
        %vm875 = vc.u32 %v873, %v869
        %v876 = vsel %vm875, 1, 0
        %v877 = vadd.s32 %v873, %v869
        %v878 = vadd.s32 %v874, %v876
        %v879 = vadd.s32 %v878, %v868
        %v880 = vadd.s32 %v879, %v870
        %v881 = vand.u32 %v858, 65535
        %v882 = vshrl.u32 %v858, 16
        %v883 = vand.u32 %v853, 65535
        %v884 = vshrl.u32 %v853, 16
        %v885 = vmul.u32 %v881, %v883
        %v886 = vmul.u32 %v881, %v884
        %v887 = vmul.u32 %v882, %v883
        %v888 = vmul.u32 %v882, %v884
        %v889 = vshll.u32 %v886, 16
        %v890 = vshrl.u32 %v886, 16
        %v891 = vshll.u32 %v887, 16
        %v892 = vshrl.u32 %v887, 16
        %vm893 = vc.u32 %v885, %v889
        %v894 = vsel %vm893, 1, 0
        %v895 = vadd.s32 %v885, %v889
        %v896 = vadd.s32 %v888, %v894
        %vm897 = vc.u32 %v895, %v891
        %v898 = vsel %vm897, 1, 0
        %v899 = vadd.s32 %v895, %v891
        %v900 = vadd.s32 %v896, %v898
        %v901 = vadd.s32 %v900, %v890
        %v902 = vadd.s32 %v901, %v892
        %v903 = vmul.u32 %v858, %v849
        %v904 = vadd.s32 %v880, %v899
        %vm905 = vc.u32 %v880, %v899
        %v906 = vadd.s32 %v902, 1
        %v907 = vsel %vm905, %v906, %v902
        %v908 = vadd.s32 %v903, %v907
        %v909 = vadd.s32 %v908, 536870912
        %v910 = vshrl.u32 %v909, 30
        %v911 = vshll.u32 %v910, 30
        %v912 = vsub.s32 %v908, %v911
        %vm913 = vcmp.lt.s32.totalorder %v912, 0
        %v914 = vsub.s32 0, %v912
        %v915 = vsel %vm913, %v914, %v912
        %v916 = vclz %v915
        %v917 = vsub.s32 %v916, 2
        %vm918 = vcmp.gt.s32.totalorder 0, %v917
        %v919 = vsel %vm918, 0, %v917
        %v920 = vsub.s32 32, %v919
        %v921 = vshll.u32 %v912, %v919
        %v922 = vshrl.u32 %v904, %v920
        %v923 = vor.u32 %v921, %v922
        %v924 = vsub.s32 4294967266, %v919
        %v925 = vadd.s32 %v924, 127
        %v926 = vshll.u32 %v925, 23
        %v927 = vor.u32 4788187, %v926
        %v928 = vand.u32 2147483647, %v927
        %v930 = vcvt.s32.f32 %v923
        %v931 = vmul.f32 %v930, %v928
        %v932 = vxor.u32 %v931, 2147483648
        %v933 = vsel %vm812, %v932, %v931
        %v934 = vsub.s32 4, %v910
        %v935 = vsel %vm812, %v934, %v910
        %v936 = vsel %vm811, %v346, %v933
        %v937 = vsel %vm811, 0, %v935
        %v938 = vmul.f32 %v936, %v936
        %v939 = vmul.f32 %v938, -0.001358992
        %v940 = vadd.f32 %v939, 0.041655596
        %v941 = vmul.f32 %v938, %v940
        %v942 = vadd.f32 %v941, -0.4999988
        %v943 = vmul.f32 %v938, %v942
        %v944 = vadd.f32 1.0, %v943
        %v945 = vmul.f32 %v936, %v936
        %v946 = vmul.f32 %v945, -0.00019511016
        %v947 = vadd.f32 %v946, 0.008332121
        %v948 = vmul.f32 %v945, %v947
        %v949 = vadd.f32 %v948, -0.16666654
        %v950 = vmul.f32 %v945, %v949
        %v951 = vadd.f32 %v950, 1.0
        %v952 = vmul.f32 %v951, %v936
        %vm953 = vweird.f32 %v346
        %v954 = vadd.s32 %v937, 3
        %v955 = vand.u32 %v954, 3
        %vm956 = vcmp.lt.s32.totalorder %v955, 2
        %vm957 = vcmp.eq.s32.totalorder %v955, 0
        %v958 = vxor.u32 %v952, 2147483648
        %v959 = vsel %vm957, %v944, %v958
        %vm960 = vcmp.eq.s32.totalorder %v955, 2
        %v961 = vxor.u32 %v944, 2147483648
        %v962 = vsel %vm960, %v961, %v952
        %v963 = vsel %vm956, %v959, %v962
        %v964 = vsel %vm953, nan, %v963
        %v965 = vstv %s230
        %v966 = vmul.f32 %v965, %v500
        %v967 = vstv %s262
        %v968 = vmul.f32 %v967, %v500
        %v969 = vstv %s232
        %v970 = vmul.f32 %v969, %v655
        %v971 = vadd.f32 %v966, %v970
        %v972 = vstv %s264
        %v973 = vmul.f32 %v972, %v655
        %v974 = vadd.f32 %v968, %v973
        %v975 = vstv %s234
        %v976 = vmul.f32 %v975, %v809
        %v977 = vadd.f32 %v971, %v976
        %v978 = vstv %s266
        %v979 = vmul.f32 %v978, %v809
        %v980 = vadd.f32 %v974, %v979
        %v981 = vstv %s236
        %v982 = vmul.f32 %v981, %v964
        %v983 = vadd.f32 %v977, %v982
        %v984 = vstv %s268
        %v985 = vmul.f32 %v984, %v964
        %v986 = vadd.f32 %v980, %v985
        %v987 = vstv %s238
        %v988 = vmul.f32 %v987, %v500
        %v989 = vstv %s270
        %v990 = vmul.f32 %v989, %v500
        %v991 = vstv %s240
        %v992 = vmul.f32 %v991, %v655
        %v993 = vadd.f32 %v988, %v992
        %v994 = vstv %s272
        %v995 = vmul.f32 %v994, %v655
        %v996 = vadd.f32 %v990, %v995
        %v997 = vstv %s242
        %v998 = vmul.f32 %v997, %v809
        %v999 = vadd.f32 %v993, %v998
        %v1000 = vstv %s274
        %v1001 = vmul.f32 %v1000, %v809
        %v1002 = vadd.f32 %v996, %v1001
        %v1003 = vstv %s244
        %v1004 = vmul.f32 %v1003, %v964
        %v1005 = vadd.f32 %v999, %v1004
        %v1006 = vstv %s276
        %v1007 = vmul.f32 %v1006, %v964
        %v1008 = vadd.f32 %v1002, %v1007
        %v1009 = vstv %s246
        %v1010 = vmul.f32 %v1009, %v500
        %v1011 = vstv %s278
        %v1012 = vmul.f32 %v1011, %v500
        %v1013 = vstv %s248
        %v1014 = vmul.f32 %v1013, %v655
        %v1015 = vadd.f32 %v1010, %v1014
        %v1016 = vstv %s280
        %v1017 = vmul.f32 %v1016, %v655
        %v1018 = vadd.f32 %v1012, %v1017
        %v1019 = vstv %s250
        %v1020 = vmul.f32 %v1019, %v809
        %v1021 = vadd.f32 %v1015, %v1020
        %v1022 = vstv %s282
        %v1023 = vmul.f32 %v1022, %v809
        %v1024 = vadd.f32 %v1018, %v1023
        %v1025 = vstv %s252
        %v1026 = vmul.f32 %v1025, %v964
        %v1027 = vadd.f32 %v1021, %v1026
        %v1028 = vstv %s284
        %v1029 = vmul.f32 %v1028, %v964
        %v1030 = vadd.f32 %v1024, %v1029
        %v1031 = vstv %s254
        %v1032 = vmul.f32 %v1031, %v500
        %v1033 = vstv %s286
        %v1034 = vmul.f32 %v1033, %v500
        %v1035 = vstv %s256
        %v1036 = vmul.f32 %v1035, %v655
        %v1037 = vadd.f32 %v1032, %v1036
        %v1038 = vstv %s288
        %v1039 = vmul.f32 %v1038, %v655
        %v1040 = vadd.f32 %v1034, %v1039
        %v1041 = vstv %s258
        %v1042 = vmul.f32 %v1041, %v809
        %v1043 = vadd.f32 %v1037, %v1042
        %v1044 = vstv %s290
        %v1045 = vmul.f32 %v1044, %v809
        %v1046 = vadd.f32 %v1040, %v1045
        %v1047 = vstv %s260
        %v1048 = vmul.f32 %v1047, %v964
        %v1049 = vadd.f32 %v1043, %v1048
        %v1050 = vstv %s292
        %v1051 = vmul.f32 %v1050, %v964
        %v1052 = vadd.f32 %v1046, %v1051
        %v1053 = vsub.f32 0.0, %v655
        %v1054 = vsub.f32 0.0, %v964
        %v1055 = vmul.f32 %v983, %v500
        %v1056 = vmul.f32 %v986, %v1053
        %v1057 = vsub.f32 %v1055, %v1056
        %v1058 = vmul.f32 %v1005, %v809
        %v1059 = vmul.f32 %v1008, %v1054
        %v1060 = vsub.f32 %v1058, %v1059
        %v1061 = vmul.f32 %v1027, %v809
        %v1062 = vmul.f32 %v1030, %v964
        %v1063 = vsub.f32 %v1061, %v1062
        %v1064 = vmul.f32 %v1049, %v500
        %v1065 = vmul.f32 %v1052, %v655
        %v1066 = vsub.f32 %v1064, %v1065
        %v1067 = vmul.f32 %v983, %v1053
        %v1068 = vmul.f32 %v986, %v500
        %v1069 = vadd.f32 %v1067, %v1068
        %v1070 = vmul.f32 %v1005, %v1054
        %v1071 = vmul.f32 %v1008, %v809
        %v1072 = vadd.f32 %v1070, %v1071
        %v1073 = vmul.f32 %v1027, %v964
        %v1074 = vmul.f32 %v1030, %v809
        %v1075 = vadd.f32 %v1073, %v1074
        %v1076 = vmul.f32 %v1049, %v655
        %v1077 = vmul.f32 %v1052, %v500
        %v1078 = vadd.f32 %v1076, %v1077
        %v1079 = vmul.f32 %v1057, %v1057
        %v1080 = vmul.f32 %v1069, %v1069
        %v1081 = vadd.f32 %v1079, %v1080
        %v1082 = vstv %s294
        %v1083 = vmul.f32 %v1082, %v1081
        %v1084 = vmul.f32 %v1060, %v1060
        %v1085 = vmul.f32 %v1072, %v1072
        %v1086 = vadd.f32 %v1084, %v1085
        %v1087 = vstv %s296
        %v1088 = vmul.f32 %v1087, %v1086
        %v1089 = vadd.f32 %v1083, %v1088
        %v1090 = vmul.f32 %v1063, %v1063
        %v1091 = vmul.f32 %v1075, %v1075
        %v1092 = vadd.f32 %v1090, %v1091
        %v1093 = vstv %s298
        %v1094 = vmul.f32 %v1093, %v1092
        %v1095 = vadd.f32 %v1089, %v1094
        %v1096 = vmul.f32 %v1066, %v1066
        %v1097 = vmul.f32 %v1078, %v1078
        %v1098 = vadd.f32 %v1096, %v1097
        %v1099 = vstv %s300
        %v1100 = vmul.f32 %v1099, %v1098
        %v1101 = vadd.f32 %v1095, %v1100
        %v1102 = vmul.f32 %v1057, %v1060
        %v1103 = vmul.f32 %v1069, %v1072
        %v1104 = vadd.f32 %v1102, %v1103
        %v1105 = vmul.f32 %v1057, %v1072
        %v1106 = vmul.f32 %v1069, %v1060
        %v1107 = vsub.f32 %v1105, %v1106
        %v1108 = vstv %s302
        %v1109 = vmul.f32 %v1108, %v1104
        %v1110 = vstv %s314
        %v1111 = vmul.f32 %v1110, %v1107
        %v1112 = vsub.f32 %v1109, %v1111
        %v1113 = vadd.f32 %v1101, %v1112
        %v1114 = vmul.f32 %v1057, %v1063
        %v1115 = vmul.f32 %v1069, %v1075
        %v1116 = vadd.f32 %v1114, %v1115
        %v1117 = vmul.f32 %v1057, %v1075
        %v1118 = vmul.f32 %v1069, %v1063
        %v1119 = vsub.f32 %v1117, %v1118
        %v1120 = vstv %s304
        %v1121 = vmul.f32 %v1120, %v1116
        %v1122 = vstv %s316
        %v1123 = vmul.f32 %v1122, %v1119
        %v1124 = vsub.f32 %v1121, %v1123
        %v1125 = vadd.f32 %v1113, %v1124
        %v1126 = vmul.f32 %v1057, %v1066
        %v1127 = vmul.f32 %v1069, %v1078
        %v1128 = vadd.f32 %v1126, %v1127
        %v1129 = vmul.f32 %v1057, %v1078
        %v1130 = vmul.f32 %v1069, %v1066
        %v1131 = vsub.f32 %v1129, %v1130
        %v1132 = vstv %s306
        %v1133 = vmul.f32 %v1132, %v1128
        %v1134 = vstv %s318
        %v1135 = vmul.f32 %v1134, %v1131
        %v1136 = vsub.f32 %v1133, %v1135
        %v1137 = vadd.f32 %v1125, %v1136
        %v1138 = vmul.f32 %v1060, %v1063
        %v1139 = vmul.f32 %v1072, %v1075
        %v1140 = vadd.f32 %v1138, %v1139
        %v1141 = vmul.f32 %v1060, %v1075
        %v1142 = vmul.f32 %v1072, %v1063
        %v1143 = vsub.f32 %v1141, %v1142
        %v1144 = vstv %s308
        %v1145 = vmul.f32 %v1144, %v1140
        %v1146 = vstv %s320
        %v1147 = vmul.f32 %v1146, %v1143
        %v1148 = vsub.f32 %v1145, %v1147
        %v1149 = vadd.f32 %v1137, %v1148
        %v1150 = vmul.f32 %v1060, %v1066
        %v1151 = vmul.f32 %v1072, %v1078
        %v1152 = vadd.f32 %v1150, %v1151
        %v1153 = vmul.f32 %v1060, %v1078
        %v1154 = vmul.f32 %v1072, %v1066
        %v1155 = vsub.f32 %v1153, %v1154
        %v1156 = vstv %s310
        %v1157 = vmul.f32 %v1156, %v1152
        %v1158 = vstv %s322
        %v1159 = vmul.f32 %v1158, %v1155
        %v1160 = vsub.f32 %v1157, %v1159
        %v1161 = vadd.f32 %v1149, %v1160
        %v1162 = vmul.f32 %v1063, %v1066
        %v1163 = vmul.f32 %v1075, %v1078
        %v1164 = vadd.f32 %v1162, %v1163
        %v1165 = vmul.f32 %v1063, %v1078
        %v1166 = vmul.f32 %v1075, %v1066
        %v1167 = vsub.f32 %v1165, %v1166
        %v1168 = vstv %s312
        %v1169 = vmul.f32 %v1168, %v1164
        %v1170 = vstv %s324
        %v1171 = vmul.f32 %v1170, %v1167
        %v1172 = vsub.f32 %v1169, %v1171
        %v1173 = vadd.f32 %v1161, %v1172
        %1174 = vst [vmem:[%s216] sm:$0xff] %v1173
        %p1175 = scmp.lt.s32.totalorder %s19, 3
        %s1176 = scalar_select %p1175, %s19, 3
        %p1177 = scmp.lt.s32.totalorder %s18, 1
        %s1178 = scalar_select %p1177, %s18, 1
        %s1179 = smul.addr %s1176, 2
        %s1180 = sadd.s32 %s1178, %s1179
        %s1181 = smul.addr %s1180, 8
        %s1182 = scalar_lea.vmem %s2, %s1181
        // Predicated region
        $region71: #{quantum_circuit_features.3} parent=61 // pred_check
          %p1183 = pneg %p93
        $region72: #{quantum_circuit_features.3} parent=61 // pred_check_branch
          %1185 = sbr.rel (%p1183) target = $region74
        $region73: #{quantum_circuit_features.3} parent=61 // pred_region
          _
        $region74: #{quantum_circuit_features.3} parent=61 // pred_fallthru
          _
      $region62: #{quantum_circuit_features.3} parent=5 // pred_fallthru
        _
      %p1186 = scmp.le.s32.totalorder 2, %s9
      // Predicated region
      $region75: #{quantum_circuit_features.3} parent=5 // pred_check
        %p1187 = pneg %p1186
      $region76: #{quantum_circuit_features.3} parent=5 // pred_check_branch
        %1189 = sbr.rel (%p1187) target = $region78
      $region77: #{quantum_circuit_features.3} parent=5 // pred_region
        %s1190 = ssub.s32 %s9, 2
        // Predicated region
        $region79: #{quantum_circuit_features.3} parent=77 // pred_check
          %p1191 = pneg %p99
        $region80: #{quantum_circuit_features.3} parent=77 // pred_check_branch
          %1193 = sbr.rel (%p1191) target = $region82
        $region81: #{quantum_circuit_features.3} parent=77 // pred_region
          %p1194 = scmp.lt.s32.totalorder %s21, 3
          %s1195 = scalar_select %p1194, %s21, 3
          %p1196 = scmp.lt.s32.totalorder %s20, 1
          %s1197 = scalar_select %p1196, %s20, 1
          %s1198 = smul.addr %s1195, 2
          %s1199 = sadd.s32 %s1197, %s1198
          %s1200 = smul.addr %s1199, 8
          %s1201 = scalar_lea.vmem %s2, %s1200
        $region82: #{quantum_circuit_features.3} parent=77 // pred_fallthru
          _
      $region78: #{quantum_circuit_features.3} parent=5 // pred_fallthru
        _
    $region6: #{quantum_circuit_features.3} parent=1 // loop_footer
      %s13 = sadd.s32 1, %s9
    $region7: #{quantum_circuit_features.3} parent=1 // loop_footer_branch
      %8 = sbr.rel target = $region3
    $region8: #{quantum_circuit_features.3} parent=1 // loop_exit
      _
    %1202 = vsyncpa [#allocation3], 1
    %s1203 = scalar_lea.sflag [#allocation3], 1
    %1204 = vsyncpa %s1203, 1

</llo_original>
